<compile_context>
chip_gen: v5e
topology: v5e:2x2
jax: 0.10.0
libtpu: 0.0.40
codegen_flags: <defaults>
</compile_context>

<pallas_src>
import functools

import jax
import jax.numpy as jnp
from jax.experimental import pallas as pl
from jax.experimental.pallas import tpu as pltpu


def _make_kernel(num_layers, nsample, N2):
    """Builds the per-(batch, N1-tile) cost-volume kernel body (channels-first)."""

    def kernel(x1_ref, x2_ref, p1_ref, p2_ref, *wb_and_out):
        w_refs = wb_and_out[: 2 * num_layers]
        out_ref = wb_and_out[2 * num_layers]

        x1 = x1_ref[...]  # (3, TN1)
        x2 = x2_ref[...]  # (3, N2)
        p1 = p1_ref[...]  # (D1, TN1)
        p2 = p2_ref[...]  # (D2, N2)

        TN1 = x1.shape[1]
        D1 = p1.shape[0]
        D2 = p2.shape[0]

        # --- partial squared distances, shape (N2, TN1), missing the per-query ||x1||^2 term
        # (constant per column, so it does not affect the argmin; added back only on the
        #  (1, TN1) min row for the distance weight).
        # Single MXU matmul via the augmented-operand trick: no x2.T / sq2.T relayouts.
        sq1 = jnp.sum(x1 * x1, axis=0, keepdims=True)                       # (1, TN1)
        sq2 = jnp.sum(x2 * x2, axis=0, keepdims=True)                       # (1, N2)
        lhs = jnp.concatenate([-2.0 * x2, sq2], axis=0)                     # (4, N2)
        rhs = jnp.concatenate([x1, jnp.ones((1, TN1), jnp.float32)], axis=0)  # (4, TN1)
        partial = jax.lax.dot_general(
            lhs, rhs, (((0,), (0,)), ((), ())),
            preferred_element_type=jnp.float32)                             # (N2, TN1)

        # row index (as f32, exact for N2 < 2^24) for unique-argmin tie-breaking.
        row = jax.lax.broadcasted_iota(jnp.int32, (N2, TN1), 0).astype(jnp.float32)
        N2f = jnp.float32(N2)
        BIG = jnp.float32(3e38)

        # --- fold MLP layer 0 into the gather ---
        W0t = w_refs[0][...]          # (H0, D1 + D2 + 3)   (pre-transposed host-side)
        b0 = w_refs[1][...]           # (H0, 1)
        W0_p1 = W0t[:, :D1]
        W0_p2 = W0t[:, D1:D1 + D2]
        W0_dir = W0t[:, D1 + D2:]
        G2 = (jnp.dot(W0_p2, p2, preferred_element_type=jnp.float32)
              + jnp.dot(W0_dir, x2, preferred_element_type=jnp.float32))    # (H0, N2)
        base0 = (jnp.dot(W0_p1, p1, preferred_element_type=jnp.float32)
                 - jnp.dot(W0_dir, x1, preferred_element_type=jnp.float32)
                 + b0)                                                       # (H0, TN1)

        cur = partial
        num = None   # sum_s inv_s * mlp(feature_s)      (Cout, TN1)
        den = None   # sum_s inv_s                        (1, TN1)

        for s in range(nsample):
            # unique argmin over N2 (sublane axis), first-index tie-break
            minval = jnp.min(cur, axis=0, keepdims=True)                     # (1, TN1)
            ismin = cur <= minval
            idx = jnp.min(jnp.where(ismin, row, N2f), axis=0, keepdims=True)  # (1, TN1)
            sel = row == idx                                                  # (N2, TN1) bool
            onehot = sel.astype(jnp.float32)

            # neighbor distance straight from the selection minval (no gather / norm needed)
            d2 = jnp.maximum(minval + sq1, jnp.float32(1e-20))               # (1, TN1)
            inv = jax.lax.rsqrt(d2)                                          # == 1/clamp(dist,1e-10)

            # layer 0: gather + affine in one matmul, then LeakyReLU(0.1)
            h = base0 + jnp.dot(G2, onehot, preferred_element_type=jnp.float32)  # (H0, TN1)
            h = jnp.maximum(h, 0.1 * h)
            for l in range(1, num_layers):
                Wt = w_refs[2 * l][...]        # (H_l, H_{l-1})
                b = w_refs[2 * l + 1][...]     # (H_l, 1)
                h = jnp.dot(Wt, h, preferred_element_type=jnp.float32) + b
                h = jnp.maximum(h, 0.1 * h)

            contrib = inv * h
            if s == 0:
                num, den = contrib, inv
            else:
                num, den = num + contrib, den + inv

            # mask out the selected neighbor for the next iteration
            if s + 1 < nsample:
                cur = jnp.where(sel, BIG, cur)

        # costVolume = sum_s (inv_s / sum inv) * h_s
        out_ref[...] = num * (1.0 / den)

    return kernel


def cost_volume_pallas(xyz1, xyz2, points1, points2, weights, biases, nsample,
                       tn1=512, vmem_limit_bytes=48 * 1024 * 1024):
    """xyz*: (B, 3, N*), points*: (B, D*, N*) float32 (channels-first).
    weights: list of (Cin_l, Cout_l), biases: list of (1, Cout_l).
    Returns (B, mlp[-1], N1)."""
    B, C, N1 = xyz1.shape
    _, _, N2 = xyz2.shape
    D1 = points1.shape[1]
    D2 = points2.shape[1]
    num_layers = len(weights)
    Cout = weights[-1].shape[1]

    # N1 tile size: cap for VMEM (v7x-safe default); fall back to full N1 if it doesn't divide.
    TN1 = N1 if N1 <= tn1 else tn1
    if N1 % TN1 != 0:
        TN1 = N1  # TODO(synk): pad ragged N1 instead of falling back to a single tile

    x1 = xyz1.astype(jnp.float32)
    x2 = xyz2.astype(jnp.float32)
    p1 = points1.astype(jnp.float32)
    p2 = points2.astype(jnp.float32)

    kernel = _make_kernel(num_layers, nsample, N2)

    in_specs = [
        pl.BlockSpec((None, C, TN1), lambda b, t: (b, 0, t)),
        pl.BlockSpec((None, C, N2), lambda b, t: (b, 0, 0)),
        pl.BlockSpec((None, D1, TN1), lambda b, t: (b, 0, t)),
        pl.BlockSpec((None, D2, N2), lambda b, t: (b, 0, 0)),
    ]
    wb_args = []
    for W, b in zip(weights, biases):
        Wt = jnp.asarray(W, jnp.float32).T                # (Cout_l, Cin_l): kernel does W^T @ x
        bt = jnp.asarray(b, jnp.float32).reshape(-1, 1)   # (Cout_l, 1)
        in_specs.append(pl.BlockSpec(tuple(Wt.shape), lambda b_, t: (0, 0)))
        in_specs.append(pl.BlockSpec(tuple(bt.shape), lambda b_, t: (0, 0)))
        wb_args.append(Wt)
        wb_args.append(bt)

    out = pl.pallas_call(
        kernel,
        out_shape=jax.ShapeDtypeStruct((B, Cout, N1), jnp.float32),
        grid=(B, N1 // TN1),
        in_specs=in_specs,
        out_specs=pl.BlockSpec((None, Cout, TN1), lambda b, t: (b, 0, t)),
        compiler_params=pltpu.CompilerParams(
            dimension_semantics=("parallel", "parallel"),
            vmem_limit_bytes=vmem_limit_bytes),
    )(x1, x2, p1, p2, *wb_args)

    return out  # already (B, Cout, N1), channels-first


def cost_volume_ref(xyz1, xyz2, points1, points2, weights, biases, nsample):
    """Pure-JAX reference mirroring the PyTorch forward (use_det_feature=False)."""
    x1 = jnp.transpose(xyz1, (0, 2, 1))
    x2 = jnp.transpose(xyz2, (0, 2, 1))
    p1 = jnp.transpose(points1, (0, 2, 1))
    p2 = jnp.transpose(points2, (0, 2, 1))
    B, N1, _ = x1.shape

    sqd = jnp.sum((x1[:, :, None, :] - x2[:, None, :, :]) ** 2, axis=-1)   # (B, N1, N2)
    _, idx = jax.lax.top_k(-sqd, nsample)                                  # (B, N1, S)

    gather = jax.vmap(lambda arr, ind: arr[ind])
    nb_xyz = gather(x2, idx)                                               # (B, N1, S, 3)
    nb_pts = gather(p2, idx)                                               # (B, N1, S, D2)

    direction = nb_xyz - x1[:, :, None, :]
    gp1 = jnp.broadcast_to(p1[:, :, None, :], (B, N1, nsample, p1.shape[-1]))
    h = jnp.concatenate([gp1, nb_pts, direction], axis=-1)                 # (B, N1, S, Cin)
    for W, b in zip(weights, biases):
        h = jnp.einsum("bnsc,cd->bnsd", h, W) + b[0]
        h = jnp.where(h > 0, h, 0.1 * h)

    dist = jnp.maximum(jnp.linalg.norm(direction, axis=-1), 1e-10)          # (B, N1, S)
    inv = 1.0 / dist
    w = inv / jnp.sum(inv, axis=-1, keepdims=True)
    cost = jnp.sum(w[..., None] * h, axis=2)                                # (B, N1, Cout)
    return jnp.transpose(cost, (0, 2, 1))                                   # (B, Cout, N1)


if __name__ == "__main__":
    # Module config (synthetic): nsample=4, in_channel = D1 + D2 + 3 = 35, mlp = [32, 32]
    B, C = 2, 3
    N1, N2 = 256, 256
    D1 = D2 = 16
    nsample = 4
    mlp = [32, 32]
    in_channel = D1 + D2 + C

    key = jax.random.PRNGKey(0)
    k1, k2, k3, k4, kw = jax.random.split(key, 5)
    xyz1 = jax.random.normal(k1, (B, C, N1), dtype=jnp.float32)
    xyz2 = jax.random.normal(k2, (B, C, N2), dtype=jnp.float32)
    points1 = jax.random.normal(k3, (B, D1, N1), dtype=jnp.float32)
    points2 = jax.random.normal(k4, (B, D2, N2), dtype=jnp.float32)

    # Conv2d(last, out, 1) parameters in (Cin, Cout) / (1, Cout) convention.
    weights, biases = [], []
    last = in_channel
    for out_ch in mlp:
        kw, kw_w, kw_b = jax.random.split(kw, 3)
        scale = 1.0 / jnp.sqrt(jnp.float32(last))
        weights.append(scale * jax.random.normal(kw_w, (last, out_ch), dtype=jnp.float32))
        biases.append(scale * jax.random.normal(kw_b, (1, out_ch), dtype=jnp.float32))
        last = out_ch

    # tn1=128 gives grid=(2, 2): exercises the N1 tiling + megacore-parallel axes.
    run = jax.jit(functools.partial(cost_volume_pallas, nsample=nsample, tn1=128))
    out = run(xyz1, xyz2, points1, points2, weights, biases)
    jax.block_until_ready(out)

    ref = cost_volume_ref(xyz1, xyz2, points1, points2, weights, biases, nsample)
    assert out.shape == (B, mlp[-1], N1), out.shape
    assert jnp.allclose(out, ref, atol=1e-3, rtol=1e-3), float(jnp.max(jnp.abs(out - ref)))

    print("KERNEL_OK")
</pallas_src>

<mosaic_0001>
module attributes {stable_mosaic.version = 11 : i64} {
  func.func @kernel(%arg0: i32, %arg1: i32, %arg2: memref<1x3x128xf32, #tpu.memory_space<vmem>>, %arg3: memref<1x3x256xf32, #tpu.memory_space<vmem>>, %arg4: memref<1x16x128xf32, #tpu.memory_space<vmem>>, %arg5: memref<1x16x256xf32, #tpu.memory_space<vmem>>, %arg6: memref<32x35xf32, #tpu.memory_space<vmem>>, %arg7: memref<32x1xf32, #tpu.memory_space<vmem>>, %arg8: memref<32x32xf32, #tpu.memory_space<vmem>>, %arg9: memref<32x1xf32, #tpu.memory_space<vmem>>, %arg10: memref<1x32x128xf32, #tpu.memory_space<vmem>>) attributes {dimension_semantics = [#tpu.dimension_semantics<parallel>, #tpu.dimension_semantics<parallel>], iteration_bounds = array<i64: 2, 2>, scalar_prefetch = 0 : i64, scratch_operands = 0 : i64, tpu.core_type = #tpu.core_type<tc>, window_params = [{transform_indices = @transform_0, window_bounds = array<i64: 1, 3, 128>}, {transform_indices = @transform_1, window_bounds = array<i64: 1, 3, 256>}, {transform_indices = @transform_2, window_bounds = array<i64: 1, 16, 128>}, {transform_indices = @transform_3, window_bounds = array<i64: 1, 16, 256>}, {pipeline_mode = #tpu.pipeline_mode<synchronous>, transform_indices = @transform_4, window_bounds = array<i64: 32, 35>}, {pipeline_mode = #tpu.pipeline_mode<synchronous>, transform_indices = @transform_5, window_bounds = array<i64: 32, 1>}, {pipeline_mode = #tpu.pipeline_mode<synchronous>, transform_indices = @transform_6, window_bounds = array<i64: 32, 32>}, {pipeline_mode = #tpu.pipeline_mode<synchronous>, transform_indices = @transform_7, window_bounds = array<i64: 32, 1>}, {transform_indices = @transform_8, window_bounds = array<i64: 1, 32, 128>}]} {
    %c0 = arith.constant 0 : index
    %c0_0 = arith.constant 0 : index
    %c0_1 = arith.constant 0 : index
    %0 = vector.load %arg2[%c0, %c0_0, %c0_1] : memref<1x3x128xf32, #tpu.memory_space<vmem>>, vector<1x3x128xf32>
    %1 = vector.shape_cast %0 : vector<1x3x128xf32> to vector<3x128xf32>
    %c0_2 = arith.constant 0 : index
    %c0_3 = arith.constant 0 : index
    %c0_4 = arith.constant 0 : index
    %2 = vector.load %arg3[%c0_2, %c0_3, %c0_4] : memref<1x3x256xf32, #tpu.memory_space<vmem>>, vector<1x3x256xf32>
    %3 = vector.shape_cast %2 : vector<1x3x256xf32> to vector<3x256xf32>
    %c0_5 = arith.constant 0 : index
    %c0_6 = arith.constant 0 : index
    %c0_7 = arith.constant 0 : index
    %4 = vector.load %arg4[%c0_5, %c0_6, %c0_7] : memref<1x16x128xf32, #tpu.memory_space<vmem>>, vector<1x16x128xf32>
    %5 = vector.shape_cast %4 : vector<1x16x128xf32> to vector<16x128xf32>
    %c0_8 = arith.constant 0 : index
    %c0_9 = arith.constant 0 : index
    %c0_10 = arith.constant 0 : index
    %6 = vector.load %arg5[%c0_8, %c0_9, %c0_10] : memref<1x16x256xf32, #tpu.memory_space<vmem>>, vector<1x16x256xf32>
    %7 = vector.shape_cast %6 : vector<1x16x256xf32> to vector<16x256xf32>
    %8 = arith.mulf %1, %1 : vector<3x128xf32>
    %cst = arith.constant dense<0.000000e+00> : vector<128xf32>
    %9 = vector.multi_reduction <add>, %8, %cst [0] : vector<3x128xf32> to vector<128xf32>
    %10 = vector.shape_cast %9 : vector<128xf32> to vector<1x128xf32>
    %11 = arith.mulf %3, %3 : vector<3x256xf32>
    %cst_11 = arith.constant dense<0.000000e+00> : vector<256xf32>
    %12 = vector.multi_reduction <add>, %11, %cst_11 [0] : vector<3x256xf32> to vector<256xf32>
    %13 = vector.shape_cast %12 : vector<256xf32> to vector<1x256xf32>
    %cst_12 = arith.constant -2.000000e+00 : f32
    %14 = vector.broadcast %cst_12 : f32 to vector<3x256xf32>
    %15 = arith.mulf %14, %3 : vector<3x256xf32>
    %16 = tpu.concatenate %15, %13 in 0 : vector<3x256xf32>, vector<1x256xf32> -> vector<4x256xf32>
    %cst_13 = arith.constant 1.000000e+00 : f32
    %17 = vector.broadcast %cst_13 : f32 to vector<1x128xf32>
    %18 = tpu.concatenate %1, %17 in 0 : vector<3x128xf32>, vector<1x128xf32> -> vector<4x128xf32>
    %cst_14 = arith.constant dense<0.000000e+00> : vector<256x128xf32>
    %19 = tpu.matmul %16, %18, %cst_14 {dimension_numbers = #tpu.dot_dimension_numbers<[0], [0], [1], [1], [0, 1, 1, 1], [], []>} : vector<4x256xf32>, vector<4x128xf32>, vector<256x128xf32> -> vector<256x128xf32>
    %20 = tpu.iota {dimensions = array<i32: 0>} : vector<256x128xi32>
    %21 = arith.sitofp %20 : vector<256x128xi32> to vector<256x128xf32>
    %c0_15 = arith.constant 0 : index
    %c0_16 = arith.constant 0 : index
    %22 = vector.load %arg6[%c0_15, %c0_16] : memref<32x35xf32, #tpu.memory_space<vmem>>, vector<32x35xf32>
    %c0_17 = arith.constant 0 : index
    %c0_18 = arith.constant 0 : index
    %23 = vector.load %arg7[%c0_17, %c0_18] : memref<32x1xf32, #tpu.memory_space<vmem>>, vector<32x1xf32>
    %24 = vector.extract_strided_slice %22 {offsets = [0, 0], sizes = [32, 16], strides = [1, 1]} : vector<32x35xf32> to vector<32x16xf32>
    %25 = vector.extract_strided_slice %22 {offsets = [0, 16], sizes = [32, 16], strides = [1, 1]} : vector<32x35xf32> to vector<32x16xf32>
    %26 = vector.extract_strided_slice %22 {offsets = [0, 32], sizes = [32, 3], strides = [1, 1]} : vector<32x35xf32> to vector<32x3xf32>
    %cst_19 = arith.constant dense<0.000000e+00> : vector<32x256xf32>
    %27 = tpu.matmul %25, %7, %cst_19 {dimension_numbers = #tpu.dot_dimension_numbers<[1], [0], [0], [1], [0, 0, 1, 1], [], []>} : vector<32x16xf32>, vector<16x256xf32>, vector<32x256xf32> -> vector<32x256xf32>
    %cst_20 = arith.constant dense<0.000000e+00> : vector<32x256xf32>
    %28 = tpu.matmul %26, %3, %cst_20 {dimension_numbers = #tpu.dot_dimension_numbers<[1], [0], [0], [1], [0, 0, 1, 1], [], []>} : vector<32x3xf32>, vector<3x256xf32>, vector<32x256xf32> -> vector<32x256xf32>
    %29 = arith.addf %27, %28 : vector<32x256xf32>
    %cst_21 = arith.constant dense<0.000000e+00> : vector<32x128xf32>
    %30 = tpu.matmul %24, %5, %cst_21 {dimension_numbers = #tpu.dot_dimension_numbers<[1], [0], [0], [1], [0, 0, 1, 1], [], []>} : vector<32x16xf32>, vector<16x128xf32>, vector<32x128xf32> -> vector<32x128xf32>
    %cst_22 = arith.constant dense<0.000000e+00> : vector<32x128xf32>
    %31 = tpu.matmul %26, %1, %cst_22 {dimension_numbers = #tpu.dot_dimension_numbers<[1], [0], [0], [1], [0, 0, 1, 1], [], []>} : vector<32x3xf32>, vector<3x128xf32>, vector<32x128xf32> -> vector<32x128xf32>
    %32 = arith.subf %30, %31 : vector<32x128xf32>
    %33 = vector.broadcast %23 : vector<32x1xf32> to vector<32x128xf32>
    %34 = arith.addf %32, %33 : vector<32x128xf32>
    %cst_23 = arith.constant dense<0x7F800000> : vector<128xf32>
    %35 = vector.multi_reduction <minimumf>, %19, %cst_23 [0] : vector<256x128xf32> to vector<128xf32>
    %36 = vector.shape_cast %35 : vector<128xf32> to vector<1x128xf32>
    %37 = vector.broadcast %36 : vector<1x128xf32> to vector<256x128xf32>
    %38 = arith.cmpf ole, %19, %37 : vector<256x128xf32>
    %cst_24 = arith.constant 2.560000e+02 : f32
    %39 = vector.broadcast %cst_24 : f32 to vector<256x128xf32>
    %40 = arith.select %38, %21, %39 : vector<256x128xi1>, vector<256x128xf32>
    %cst_25 = arith.constant dense<0x7F800000> : vector<128xf32>
    %41 = vector.multi_reduction <minimumf>, %40, %cst_25 [0] : vector<256x128xf32> to vector<128xf32>
    %42 = vector.shape_cast %41 : vector<128xf32> to vector<1x128xf32>
    %43 = vector.broadcast %42 : vector<1x128xf32> to vector<256x128xf32>
    %44 = arith.cmpf oeq, %21, %43 : vector<256x128xf32>
    %45 = arith.extui %44 : vector<256x128xi1> to vector<256x128xi32>
    %46 = arith.sitofp %45 : vector<256x128xi32> to vector<256x128xf32>
    %47 = arith.addf %36, %10 : vector<1x128xf32>
    %cst_26 = arith.constant 9.99999968E-21 : f32
    %48 = vector.broadcast %cst_26 : f32 to vector<1x128xf32>
    %49 = arith.maximumf %47, %48 : vector<1x128xf32>
    %50 = math.rsqrt %49 : vector<1x128xf32>
    %cst_27 = arith.constant dense<0.000000e+00> : vector<32x128xf32>
    %51 = tpu.matmul %29, %46, %cst_27 {dimension_numbers = #tpu.dot_dimension_numbers<[1], [0], [0], [1], [0, 0, 1, 1], [], []>} : vector<32x256xf32>, vector<256x128xf32>, vector<32x128xf32> -> vector<32x128xf32>
    %52 = arith.addf %34, %51 : vector<32x128xf32>
    %cst_28 = arith.constant 1.000000e-01 : f32
    %53 = vector.broadcast %cst_28 : f32 to vector<32x128xf32>
    %54 = arith.mulf %53, %52 : vector<32x128xf32>
    %55 = arith.maximumf %52, %54 : vector<32x128xf32>
    %c0_29 = arith.constant 0 : index
    %c0_30 = arith.constant 0 : index
    %56 = vector.load %arg8[%c0_29, %c0_30] : memref<32x32xf32, #tpu.memory_space<vmem>>, vector<32x32xf32>
    %c0_31 = arith.constant 0 : index
    %c0_32 = arith.constant 0 : index
    %57 = vector.load %arg9[%c0_31, %c0_32] : memref<32x1xf32, #tpu.memory_space<vmem>>, vector<32x1xf32>
    %cst_33 = arith.constant dense<0.000000e+00> : vector<32x128xf32>
    %58 = tpu.matmul %56, %55, %cst_33 {dimension_numbers = #tpu.dot_dimension_numbers<[1], [0], [0], [1], [0, 0, 1, 1], [], []>} : vector<32x32xf32>, vector<32x128xf32>, vector<32x128xf32> -> vector<32x128xf32>
    %59 = vector.broadcast %57 : vector<32x1xf32> to vector<32x128xf32>
    %60 = arith.addf %58, %59 : vector<32x128xf32>
    %cst_34 = arith.constant 1.000000e-01 : f32
    %61 = vector.broadcast %cst_34 : f32 to vector<32x128xf32>
    %62 = arith.mulf %61, %60 : vector<32x128xf32>
    %63 = arith.maximumf %60, %62 : vector<32x128xf32>
    %64 = vector.broadcast %50 : vector<1x128xf32> to vector<32x128xf32>
    %65 = arith.mulf %64, %63 : vector<32x128xf32>
    %cst_35 = arith.constant 3.000000e+38 : f32
    %66 = vector.broadcast %cst_35 : f32 to vector<256x128xf32>
    %67 = arith.select %44, %66, %19 : vector<256x128xi1>, vector<256x128xf32>
    %cst_36 = arith.constant dense<0x7F800000> : vector<128xf32>
    %68 = vector.multi_reduction <minimumf>, %67, %cst_36 [0] : vector<256x128xf32> to vector<128xf32>
    %69 = vector.shape_cast %68 : vector<128xf32> to vector<1x128xf32>
    %70 = vector.broadcast %69 : vector<1x128xf32> to vector<256x128xf32>
    %71 = arith.cmpf ole, %67, %70 : vector<256x128xf32>
    %cst_37 = arith.constant 2.560000e+02 : f32
    %72 = vector.broadcast %cst_37 : f32 to vector<256x128xf32>
    %73 = arith.select %71, %21, %72 : vector<256x128xi1>, vector<256x128xf32>
    %cst_38 = arith.constant dense<0x7F800000> : vector<128xf32>
    %74 = vector.multi_reduction <minimumf>, %73, %cst_38 [0] : vector<256x128xf32> to vector<128xf32>
    %75 = vector.shape_cast %74 : vector<128xf32> to vector<1x128xf32>
    %76 = vector.broadcast %75 : vector<1x128xf32> to vector<256x128xf32>
    %77 = arith.cmpf oeq, %21, %76 : vector<256x128xf32>
    %78 = arith.extui %77 : vector<256x128xi1> to vector<256x128xi32>
    %79 = arith.sitofp %78 : vector<256x128xi32> to vector<256x128xf32>
    %80 = arith.addf %69, %10 : vector<1x128xf32>
    %cst_39 = arith.constant 9.99999968E-21 : f32
    %81 = vector.broadcast %cst_39 : f32 to vector<1x128xf32>
    %82 = arith.maximumf %80, %81 : vector<1x128xf32>
    %83 = math.rsqrt %82 : vector<1x128xf32>
    %cst_40 = arith.constant dense<0.000000e+00> : vector<32x128xf32>
    %84 = tpu.matmul %29, %79, %cst_40 {dimension_numbers = #tpu.dot_dimension_numbers<[1], [0], [0], [1], [0, 0, 1, 1], [], []>} : vector<32x256xf32>, vector<256x128xf32>, vector<32x128xf32> -> vector<32x128xf32>
    %85 = arith.addf %34, %84 : vector<32x128xf32>
    %cst_41 = arith.constant 1.000000e-01 : f32
    %86 = vector.broadcast %cst_41 : f32 to vector<32x128xf32>
    %87 = arith.mulf %86, %85 : vector<32x128xf32>
    %88 = arith.maximumf %85, %87 : vector<32x128xf32>
    %c0_42 = arith.constant 0 : index
    %c0_43 = arith.constant 0 : index
    %89 = vector.load %arg8[%c0_42, %c0_43] : memref<32x32xf32, #tpu.memory_space<vmem>>, vector<32x32xf32>
    %c0_44 = arith.constant 0 : index
    %c0_45 = arith.constant 0 : index
    %90 = vector.load %arg9[%c0_44, %c0_45] : memref<32x1xf32, #tpu.memory_space<vmem>>, vector<32x1xf32>
    %cst_46 = arith.constant dense<0.000000e+00> : vector<32x128xf32>
    %91 = tpu.matmul %89, %88, %cst_46 {dimension_numbers = #tpu.dot_dimension_numbers<[1], [0], [0], [1], [0, 0, 1, 1], [], []>} : vector<32x32xf32>, vector<32x128xf32>, vector<32x128xf32> -> vector<32x128xf32>
    %92 = vector.broadcast %90 : vector<32x1xf32> to vector<32x128xf32>
    %93 = arith.addf %91, %92 : vector<32x128xf32>
    %cst_47 = arith.constant 1.000000e-01 : f32
    %94 = vector.broadcast %cst_47 : f32 to vector<32x128xf32>
    %95 = arith.mulf %94, %93 : vector<32x128xf32>
    %96 = arith.maximumf %93, %95 : vector<32x128xf32>
    %97 = vector.broadcast %83 : vector<1x128xf32> to vector<32x128xf32>
    %98 = arith.mulf %97, %96 : vector<32x128xf32>
    %99 = arith.addf %65, %98 : vector<32x128xf32>
    %100 = arith.addf %50, %83 : vector<1x128xf32>
    %cst_48 = arith.constant 3.000000e+38 : f32
    %101 = vector.broadcast %cst_48 : f32 to vector<256x128xf32>
    %102 = arith.select %77, %101, %67 : vector<256x128xi1>, vector<256x128xf32>
    %cst_49 = arith.constant dense<0x7F800000> : vector<128xf32>
    %103 = vector.multi_reduction <minimumf>, %102, %cst_49 [0] : vector<256x128xf32> to vector<128xf32>
    %104 = vector.shape_cast %103 : vector<128xf32> to vector<1x128xf32>
    %105 = vector.broadcast %104 : vector<1x128xf32> to vector<256x128xf32>
    %106 = arith.cmpf ole, %102, %105 : vector<256x128xf32>
    %cst_50 = arith.constant 2.560000e+02 : f32
    %107 = vector.broadcast %cst_50 : f32 to vector<256x128xf32>
    %108 = arith.select %106, %21, %107 : vector<256x128xi1>, vector<256x128xf32>
    %cst_51 = arith.constant dense<0x7F800000> : vector<128xf32>
    %109 = vector.multi_reduction <minimumf>, %108, %cst_51 [0] : vector<256x128xf32> to vector<128xf32>
    %110 = vector.shape_cast %109 : vector<128xf32> to vector<1x128xf32>
    %111 = vector.broadcast %110 : vector<1x128xf32> to vector<256x128xf32>
    %112 = arith.cmpf oeq, %21, %111 : vector<256x128xf32>
    %113 = arith.extui %112 : vector<256x128xi1> to vector<256x128xi32>
    %114 = arith.sitofp %113 : vector<256x128xi32> to vector<256x128xf32>
    %115 = arith.addf %104, %10 : vector<1x128xf32>
    %cst_52 = arith.constant 9.99999968E-21 : f32
    %116 = vector.broadcast %cst_52 : f32 to vector<1x128xf32>
    %117 = arith.maximumf %115, %116 : vector<1x128xf32>
    %118 = math.rsqrt %117 : vector<1x128xf32>
    %cst_53 = arith.constant dense<0.000000e+00> : vector<32x128xf32>
    %119 = tpu.matmul %29, %114, %cst_53 {dimension_numbers = #tpu.dot_dimension_numbers<[1], [0], [0], [1], [0, 0, 1, 1], [], []>} : vector<32x256xf32>, vector<256x128xf32>, vector<32x128xf32> -> vector<32x128xf32>
    %120 = arith.addf %34, %119 : vector<32x128xf32>
    %cst_54 = arith.constant 1.000000e-01 : f32
    %121 = vector.broadcast %cst_54 : f32 to vector<32x128xf32>
    %122 = arith.mulf %121, %120 : vector<32x128xf32>
    %123 = arith.maximumf %120, %122 : vector<32x128xf32>
    %c0_55 = arith.constant 0 : index
    %c0_56 = arith.constant 0 : index
    %124 = vector.load %arg8[%c0_55, %c0_56] : memref<32x32xf32, #tpu.memory_space<vmem>>, vector<32x32xf32>
    %c0_57 = arith.constant 0 : index
    %c0_58 = arith.constant 0 : index
    %125 = vector.load %arg9[%c0_57, %c0_58] : memref<32x1xf32, #tpu.memory_space<vmem>>, vector<32x1xf32>
    %cst_59 = arith.constant dense<0.000000e+00> : vector<32x128xf32>
    %126 = tpu.matmul %124, %123, %cst_59 {dimension_numbers = #tpu.dot_dimension_numbers<[1], [0], [0], [1], [0, 0, 1, 1], [], []>} : vector<32x32xf32>, vector<32x128xf32>, vector<32x128xf32> -> vector<32x128xf32>
    %127 = vector.broadcast %125 : vector<32x1xf32> to vector<32x128xf32>
    %128 = arith.addf %126, %127 : vector<32x128xf32>
    %cst_60 = arith.constant 1.000000e-01 : f32
    %129 = vector.broadcast %cst_60 : f32 to vector<32x128xf32>
    %130 = arith.mulf %129, %128 : vector<32x128xf32>
    %131 = arith.maximumf %128, %130 : vector<32x128xf32>
    %132 = vector.broadcast %118 : vector<1x128xf32> to vector<32x128xf32>
    %133 = arith.mulf %132, %131 : vector<32x128xf32>
    %134 = arith.addf %99, %133 : vector<32x128xf32>
    %135 = arith.addf %100, %118 : vector<1x128xf32>
    %cst_61 = arith.constant 3.000000e+38 : f32
    %136 = vector.broadcast %cst_61 : f32 to vector<256x128xf32>
    %137 = arith.select %112, %136, %102 : vector<256x128xi1>, vector<256x128xf32>
    %cst_62 = arith.constant dense<0x7F800000> : vector<128xf32>
    %138 = vector.multi_reduction <minimumf>, %137, %cst_62 [0] : vector<256x128xf32> to vector<128xf32>
    %139 = vector.shape_cast %138 : vector<128xf32> to vector<1x128xf32>
    %140 = vector.broadcast %139 : vector<1x128xf32> to vector<256x128xf32>
    %141 = arith.cmpf ole, %137, %140 : vector<256x128xf32>
    %cst_63 = arith.constant 2.560000e+02 : f32
    %142 = vector.broadcast %cst_63 : f32 to vector<256x128xf32>
    %143 = arith.select %141, %21, %142 : vector<256x128xi1>, vector<256x128xf32>
    %cst_64 = arith.constant dense<0x7F800000> : vector<128xf32>
    %144 = vector.multi_reduction <minimumf>, %143, %cst_64 [0] : vector<256x128xf32> to vector<128xf32>
    %145 = vector.shape_cast %144 : vector<128xf32> to vector<1x128xf32>
    %146 = vector.broadcast %145 : vector<1x128xf32> to vector<256x128xf32>
    %147 = arith.cmpf oeq, %21, %146 : vector<256x128xf32>
    %148 = arith.extui %147 : vector<256x128xi1> to vector<256x128xi32>
    %149 = arith.sitofp %148 : vector<256x128xi32> to vector<256x128xf32>
    %150 = arith.addf %139, %10 : vector<1x128xf32>
    %cst_65 = arith.constant 9.99999968E-21 : f32
    %151 = vector.broadcast %cst_65 : f32 to vector<1x128xf32>
    %152 = arith.maximumf %150, %151 : vector<1x128xf32>
    %153 = math.rsqrt %152 : vector<1x128xf32>
    %cst_66 = arith.constant dense<0.000000e+00> : vector<32x128xf32>
    %154 = tpu.matmul %29, %149, %cst_66 {dimension_numbers = #tpu.dot_dimension_numbers<[1], [0], [0], [1], [0, 0, 1, 1], [], []>} : vector<32x256xf32>, vector<256x128xf32>, vector<32x128xf32> -> vector<32x128xf32>
    %155 = arith.addf %34, %154 : vector<32x128xf32>
    %cst_67 = arith.constant 1.000000e-01 : f32
    %156 = vector.broadcast %cst_67 : f32 to vector<32x128xf32>
    %157 = arith.mulf %156, %155 : vector<32x128xf32>
    %158 = arith.maximumf %155, %157 : vector<32x128xf32>
    %c0_68 = arith.constant 0 : index
    %c0_69 = arith.constant 0 : index
    %159 = vector.load %arg8[%c0_68, %c0_69] : memref<32x32xf32, #tpu.memory_space<vmem>>, vector<32x32xf32>
    %c0_70 = arith.constant 0 : index
    %c0_71 = arith.constant 0 : index
    %160 = vector.load %arg9[%c0_70, %c0_71] : memref<32x1xf32, #tpu.memory_space<vmem>>, vector<32x1xf32>
    %cst_72 = arith.constant dense<0.000000e+00> : vector<32x128xf32>
    %161 = tpu.matmul %159, %158, %cst_72 {dimension_numbers = #tpu.dot_dimension_numbers<[1], [0], [0], [1], [0, 0, 1, 1], [], []>} : vector<32x32xf32>, vector<32x128xf32>, vector<32x128xf32> -> vector<32x128xf32>
    %162 = vector.broadcast %160 : vector<32x1xf32> to vector<32x128xf32>
    %163 = arith.addf %161, %162 : vector<32x128xf32>
    %cst_73 = arith.constant 1.000000e-01 : f32
    %164 = vector.broadcast %cst_73 : f32 to vector<32x128xf32>
    %165 = arith.mulf %164, %163 : vector<32x128xf32>
    %166 = arith.maximumf %163, %165 : vector<32x128xf32>
    %167 = vector.broadcast %153 : vector<1x128xf32> to vector<32x128xf32>
    %168 = arith.mulf %167, %166 : vector<32x128xf32>
    %169 = arith.addf %134, %168 : vector<32x128xf32>
    %170 = arith.addf %135, %153 : vector<1x128xf32>
    %cst_74 = arith.constant 1.000000e+00 : f32
    %171 = vector.broadcast %cst_74 : f32 to vector<1x128xf32>
    %172 = arith.divf %171, %170 : vector<1x128xf32>
    %173 = vector.broadcast %172 : vector<1x128xf32> to vector<32x128xf32>
    %174 = arith.mulf %169, %173 : vector<32x128xf32>
    %c0_75 = arith.constant 0 : index
    %c0_76 = arith.constant 0 : index
    %c0_77 = arith.constant 0 : index
    %175 = vector.load %arg10[%c0_75, %c0_76, %c0_77] : memref<1x32x128xf32, #tpu.memory_space<vmem>>, vector<1x32x128xf32>
    %176 = vector.shape_cast %175 : vector<1x32x128xf32> to vector<32x128xf32>
    %177 = vector.shape_cast %174 : vector<32x128xf32> to vector<1x32x128xf32>
    tpu.vector_store %arg10[%c0_75, %c0_76, %c0_77], %177 {strides = array<i32>} : memref<1x32x128xf32, #tpu.memory_space<vmem>>, vector<1x32x128xf32>,
    return
  }
  func.func @transform_0(%arg0: i32, %arg1: i32) -> (i32, i32, i32) {
    %c0_i32 = arith.constant 0 : i32
    %c0_i32_0 = arith.constant 0 : i32
    return %arg0, %c0_i32, %arg1 : i32, i32, i32
  }
  func.func @transform_1(%arg0: i32, %arg1: i32) -> (i32, i32, i32) {
    %c0_i32 = arith.constant 0 : i32
    %c0_i32_0 = arith.constant 0 : i32
    %c0_i32_1 = arith.constant 0 : i32
    return %arg0, %c0_i32, %c0_i32_0 : i32, i32, i32
  }
  func.func @transform_2(%arg0: i32, %arg1: i32) -> (i32, i32, i32) {
    %c0_i32 = arith.constant 0 : i32
    %c0_i32_0 = arith.constant 0 : i32
    return %arg0, %c0_i32, %arg1 : i32, i32, i32
  }
  func.func @transform_3(%arg0: i32, %arg1: i32) -> (i32, i32, i32) {
    %c0_i32 = arith.constant 0 : i32
    %c0_i32_0 = arith.constant 0 : i32
    %c0_i32_1 = arith.constant 0 : i32
    return %arg0, %c0_i32, %c0_i32_0 : i32, i32, i32
  }
  func.func @transform_4(%arg0: i32, %arg1: i32) -> (i32, i32) {
    %c0_i32 = arith.constant 0 : i32
    %c0_i32_0 = arith.constant 0 : i32
    %c0_i32_1 = arith.constant 0 : i32
    return %c0_i32, %c0_i32_0 : i32, i32
  }
  func.func @transform_5(%arg0: i32, %arg1: i32) -> (i32, i32) {
    %c0_i32 = arith.constant 0 : i32
    %c0_i32_0 = arith.constant 0 : i32
    %c0_i32_1 = arith.constant 0 : i32
    return %c0_i32, %c0_i32_0 : i32, i32
  }
  func.func @transform_6(%arg0: i32, %arg1: i32) -> (i32, i32) {
    %c0_i32 = arith.constant 0 : i32
    %c0_i32_0 = arith.constant 0 : i32
    %c0_i32_1 = arith.constant 0 : i32
    return %c0_i32, %c0_i32_0 : i32, i32
  }
  func.func @transform_7(%arg0: i32, %arg1: i32) -> (i32, i32) {
    %c0_i32 = arith.constant 0 : i32
    %c0_i32_0 = arith.constant 0 : i32
    %c0_i32_1 = arith.constant 0 : i32
    return %c0_i32, %c0_i32_0 : i32, i32
  }
  func.func @transform_8(%arg0: i32, %arg1: i32) -> (i32, i32, i32) {
    %c0_i32 = arith.constant 0 : i32
    %c0_i32_0 = arith.constant 0 : i32
    return %arg0, %c0_i32, %arg1 : i32, i32, i32
  }
}

</mosaic_0001>

<llo_original>
// kernel: cost_volume_pallas.1
$region0: #{cost_volume_pallas.1}
  #allocation0 [shape = 'u32[]', space=smem, size = 0x4, offset = 0x4, fixed_abs, tag = 'smem constant byte address 0x4 - core index']
  #allocation1 [shape = 'u32[72,128]{1,0:T(1,128)}', space=vmem, size = 0x9000, scoped, tag = 'internal scratch']
  %s0 = inlined_call_operand.vmem [shape: f32[2,3,256], index: 0, kind: input, shape index: {}]
  %s1 = inlined_call_operand.vmem [shape: f32[2,3,256], index: 1, kind: input, shape index: {}]
  %s2 = inlined_call_operand.vmem [shape: f32[2,16,256], index: 2, kind: input, shape index: {}]
  %s3 = inlined_call_operand.vmem [shape: f32[2,16,256], index: 3, kind: input, shape index: {}]
  %s4 = inlined_call_operand.vmem [shape: f32[32,35], index: 4, kind: input, shape index: {}]
  %s5 = inlined_call_operand.vmem [shape: f32[32,1], index: 5, kind: input, shape index: {}]
  %s6 = inlined_call_operand.vmem [shape: f32[32,32], index: 6, kind: input, shape index: {}]
  %s7 = inlined_call_operand.vmem [shape: f32[32,1], index: 7, kind: input, shape index: {}]
  %s8 = inlined_call_operand.hbm [shape: f32[2,32,256], index: 8, kind: output, shape index: {}]
  %s9 = sld [smem:[#allocation0]]
  $region103: #{cost_volume_pallas.1} parent=0
    _
  %s11 = ssub.s32 1, %s9
  %s12 = scalar_select 0, %s11, %s9
  $region1: #{cost_volume_pallas.1} parent=0
    #allocation2 [shape = 'u8[16384]{0}', space=vmem, size = 0x4000, scoped, tag = 'input window, operand 2']
    #allocation3 [shape = 'u8[32768]{0}', space=vmem, size = 0x8000, scoped, tag = 'output window, operand 0']
    #allocation4 [shape = 's32[2]{0}', space=sflag, size = 0x8, scoped, tag = 'scoped memory for cost_volume_pallas.1']
    %13 = vsyncpa [#allocation4], 0
    %s14 = scalar_lea.sflag [#allocation4], 1
    %15 = vsyncpa %s14, 0
    loop: start=0, step=1, limit=6
    $region2: #{cost_volume_pallas.1} parent=1 // loop_pre_header
      _
    $region3: #{cost_volume_pallas.1} parent=1 // loop_header
      %s17 = sphi 0, %s21
      %p18 = scmp.ge.s32.totalorder %s17, 6
      %s24 = sphi 0, %s36
      %s25 = sphi 0, %s32
      %s26 = sphi 0, %s24
      %s27 = sphi 0, %s25
      %s28 = sphi 0, %s26
      %s29 = sphi 0, %s27
      %s41 = sphi 0, %s43
      %s44 = sphi 0, %s41
      %s45 = sphi 0, %s44
      %s61 = sphi 0, %s45
      %s67 = sphi 0, %s69
      %s70 = sphi 0, %s67
      %s71 = sphi 0, %s70
      %s87 = sphi 0, %s71
      %s95 = sphi 0, %s97
      %s98 = sphi 0, %s95
      %s99 = sphi 0, %s98
      %s115 = sphi 0, %s99
      %s121 = sphi 0, %s123
      %s124 = sphi 0, %s121
      %s125 = sphi 0, %s124
      %s141 = sphi 0, %s125
      %s145 = sphi 0, %s145
      %s147 = sphi 0, %s145
      %s148 = sphi 0, %s147
      %s162 = sphi 0, %s148
      %s166 = sphi 0, %s166
      %s168 = sphi 0, %s166
      %s169 = sphi 0, %s168
      %s183 = sphi 0, %s169
      %s187 = sphi 0, %s187
      %s189 = sphi 0, %s187
      %s190 = sphi 0, %s189
      %s204 = sphi 0, %s190
      %s208 = sphi 0, %s208
      %s210 = sphi 0, %s208
      %s211 = sphi 0, %s210
      %s225 = sphi 0, %s211
      %s233 = sphi 0, %s235
      %s236 = sphi 0, %s233
      %s237 = sphi 0, %s236
      %s253 = sphi 0, %s237
    $region4: #{cost_volume_pallas.1} parent=1 // loop_header_branch
      %20 = sbr.rel (%p18) target = $region8
    $region5: #{cost_volume_pallas.1} parent=1 // loop_body
      %s22 = ssub.s32 %s17, 1
      %s23 = ssub.s32 %s17, 2
      %s30 = sadd.s32 1, %s25
      %p31 = scmp.ge.s32.totalorder %s30, 2
      %s32 = scalar_select %p31, 0, %s30
      %s33 = sadd.s32 1, %s24
      %s34 = scalar_select %p31, %s33, %s24
      %p35 = scmp.ge.s32.totalorder %s34, 2
      %s36 = scalar_select %p35, 0, %s34
      %s37 = ssub.s32 %s24, %s36
      %s38 = ssub.s32 %s25, %s32
      %s39 = sor.u32 %s37, %s38
      %p40 = scmp.eq.s32.totalorder %s39, 0
      %s42 = sadd.s32 %s41, 1
      %s43 = scalar_select %p40, %s41, %s42
      %p46 = pneg %p40
      %p47 = scmp.eq.s32.totalorder %s17, 3
      %p48 = por %p46, %p47
      %p49 = scmp.ne.s32.totalorder %s41, %s44
      %p50 = scmp.eq.s32.totalorder %s17, 0
      %p51 = por %p49, %p50
      %p52 = scmp.ne.s32.totalorder %s41, %s44
      %p53 = scmp.eq.s32.totalorder %s22, 3
      %p54 = por %p52, %p53
      %p55 = scmp.ne.s32.totalorder %s44, %s45
      %p56 = scmp.eq.s32.totalorder %s22, 0
      %p57 = por %p55, %p56
      %p58 = scmp.ne.s32.totalorder %s44, %s45
      %p59 = scmp.eq.s32.totalorder %s23, 3
      %p60 = por %p58, %p59
      %p62 = scmp.ne.s32.totalorder %s45, %s61
      %p63 = scmp.eq.s32.totalorder %s23, 0
      %p64 = por %p62, %p63
      %s65 = ssub.s32 %s24, %s36
      %p66 = scmp.eq.s32.totalorder %s65, 0
      %s68 = sadd.s32 %s67, 1
      %s69 = scalar_select %p66, %s67, %s68
      %p72 = pneg %p66
      %p73 = scmp.eq.s32.totalorder %s17, 3
      %p74 = por %p72, %p73
      %p75 = scmp.ne.s32.totalorder %s67, %s70
      %p76 = scmp.eq.s32.totalorder %s17, 0
      %p77 = por %p75, %p76
      %p78 = scmp.ne.s32.totalorder %s67, %s70
      %p79 = scmp.eq.s32.totalorder %s22, 3
      %p80 = por %p78, %p79
      %p81 = scmp.ne.s32.totalorder %s70, %s71
      %p82 = scmp.eq.s32.totalorder %s22, 0
      %p83 = por %p81, %p82
      %p84 = scmp.ne.s32.totalorder %s70, %s71
      %p85 = scmp.eq.s32.totalorder %s23, 3
      %p86 = por %p84, %p85
      %p88 = scmp.ne.s32.totalorder %s71, %s87
      %p89 = scmp.eq.s32.totalorder %s23, 0
      %p90 = por %p88, %p89
      %s91 = ssub.s32 %s24, %s36
      %s92 = ssub.s32 %s25, %s32
      %s93 = sor.u32 %s91, %s92
      %p94 = scmp.eq.s32.totalorder %s93, 0
      %s96 = sadd.s32 %s95, 1
      %s97 = scalar_select %p94, %s95, %s96
      %p100 = pneg %p94
      %p101 = scmp.eq.s32.totalorder %s17, 3
      %p102 = por %p100, %p101
      %p103 = scmp.ne.s32.totalorder %s95, %s98
      %p104 = scmp.eq.s32.totalorder %s17, 0
      %p105 = por %p103, %p104
      %p106 = scmp.ne.s32.totalorder %s95, %s98
      %p107 = scmp.eq.s32.totalorder %s22, 3
      %p108 = por %p106, %p107
      %p109 = scmp.ne.s32.totalorder %s98, %s99
      %p110 = scmp.eq.s32.totalorder %s22, 0
      %p111 = por %p109, %p110
      %p112 = scmp.ne.s32.totalorder %s98, %s99
      %p113 = scmp.eq.s32.totalorder %s23, 3
      %p114 = por %p112, %p113
      %p116 = scmp.ne.s32.totalorder %s99, %s115
      %p117 = scmp.eq.s32.totalorder %s23, 0
      %p118 = por %p116, %p117
      %s119 = ssub.s32 %s24, %s36
      %p120 = scmp.eq.s32.totalorder %s119, 0
      %s122 = sadd.s32 %s121, 1
      %s123 = scalar_select %p120, %s121, %s122
      %p126 = pneg %p120
      %p127 = scmp.eq.s32.totalorder %s17, 3
      %p128 = por %p126, %p127
      %p129 = scmp.ne.s32.totalorder %s121, %s124
      %p130 = scmp.eq.s32.totalorder %s17, 0
      %p131 = por %p129, %p130
      %p132 = scmp.ne.s32.totalorder %s121, %s124
      %p133 = scmp.eq.s32.totalorder %s22, 3
      %p134 = por %p132, %p133
      %p135 = scmp.ne.s32.totalorder %s124, %s125
      %p136 = scmp.eq.s32.totalorder %s22, 0
      %p137 = por %p135, %p136
      %p138 = scmp.ne.s32.totalorder %s124, %s125
      %p139 = scmp.eq.s32.totalorder %s23, 3
      %p140 = por %p138, %p139
      %p142 = scmp.ne.s32.totalorder %s125, %s141
      %p143 = scmp.eq.s32.totalorder %s23, 0
      %p144 = por %p142, %p143
      %s146 = sadd.s32 %s145, 1
      %p149 = scmp.eq.s32.totalorder %s17, 3
      %p150 = scmp.ne.s32.totalorder %s145, %s147
      %p151 = scmp.eq.s32.totalorder %s17, 0
      %p152 = por %p150, %p151
      %p153 = scmp.ne.s32.totalorder %s145, %s147
      %p154 = scmp.eq.s32.totalorder %s22, 3
      %p155 = por %p153, %p154
      %p156 = scmp.ne.s32.totalorder %s147, %s148
      %p157 = scmp.eq.s32.totalorder %s22, 0
      %p158 = por %p156, %p157
      %p159 = scmp.ne.s32.totalorder %s147, %s148
      %p160 = scmp.eq.s32.totalorder %s23, 3
      %p161 = por %p159, %p160
      %p163 = scmp.ne.s32.totalorder %s148, %s162
      %p164 = scmp.eq.s32.totalorder %s23, 0
      %p165 = por %p163, %p164
      %s167 = sadd.s32 %s166, 1
      %p170 = scmp.eq.s32.totalorder %s17, 3
      %p171 = scmp.ne.s32.totalorder %s166, %s168
      %p172 = scmp.eq.s32.totalorder %s17, 0
      %p173 = por %p171, %p172
      %p174 = scmp.ne.s32.totalorder %s166, %s168
      %p175 = scmp.eq.s32.totalorder %s22, 3
      %p176 = por %p174, %p175
      %p177 = scmp.ne.s32.totalorder %s168, %s169
      %p178 = scmp.eq.s32.totalorder %s22, 0
      %p179 = por %p177, %p178
      %p180 = scmp.ne.s32.totalorder %s168, %s169
      %p181 = scmp.eq.s32.totalorder %s23, 3
      %p182 = por %p180, %p181
      %p184 = scmp.ne.s32.totalorder %s169, %s183
      %p185 = scmp.eq.s32.totalorder %s23, 0
      %p186 = por %p184, %p185
      %s188 = sadd.s32 %s187, 1
      %p191 = scmp.eq.s32.totalorder %s17, 3
      %p192 = scmp.ne.s32.totalorder %s187, %s189
      %p193 = scmp.eq.s32.totalorder %s17, 0
      %p194 = por %p192, %p193
      %p195 = scmp.ne.s32.totalorder %s187, %s189
      %p196 = scmp.eq.s32.totalorder %s22, 3
      %p197 = por %p195, %p196
      %p198 = scmp.ne.s32.totalorder %s189, %s190
      %p199 = scmp.eq.s32.totalorder %s22, 0
      %p200 = por %p198, %p199
      %p201 = scmp.ne.s32.totalorder %s189, %s190
      %p202 = scmp.eq.s32.totalorder %s23, 3
      %p203 = por %p201, %p202
      %p205 = scmp.ne.s32.totalorder %s190, %s204
      %p206 = scmp.eq.s32.totalorder %s23, 0
      %p207 = por %p205, %p206
      %s209 = sadd.s32 %s208, 1
      %p212 = scmp.eq.s32.totalorder %s17, 3
      %p213 = scmp.ne.s32.totalorder %s208, %s210
      %p214 = scmp.eq.s32.totalorder %s17, 0
      %p215 = por %p213, %p214
      %p216 = scmp.ne.s32.totalorder %s208, %s210
      %p217 = scmp.eq.s32.totalorder %s22, 3
      %p218 = por %p216, %p217
      %p219 = scmp.ne.s32.totalorder %s210, %s211
      %p220 = scmp.eq.s32.totalorder %s22, 0
      %p221 = por %p219, %p220
      %p222 = scmp.ne.s32.totalorder %s210, %s211
      %p223 = scmp.eq.s32.totalorder %s23, 3
      %p224 = por %p222, %p223
      %p226 = scmp.ne.s32.totalorder %s211, %s225
      %p227 = scmp.eq.s32.totalorder %s23, 0
      %p228 = por %p226, %p227
      %s229 = ssub.s32 %s24, %s36
      %s230 = ssub.s32 %s25, %s32
      %s231 = sor.u32 %s229, %s230
      %p232 = scmp.eq.s32.totalorder %s231, 0
      %s234 = sadd.s32 %s233, 1
      %s235 = scalar_select %p232, %s233, %s234
      %p238 = pneg %p232
      %p239 = scmp.eq.s32.totalorder %s17, 3
      %p240 = por %p238, %p239
      %p241 = scmp.ne.s32.totalorder %s233, %s236
      %p242 = scmp.eq.s32.totalorder %s17, 0
      %p243 = por %p241, %p242
      %p244 = scmp.ne.s32.totalorder %s233, %s236
      %p245 = scmp.eq.s32.totalorder %s22, 3
      %p246 = por %p244, %p245
      %p247 = scmp.ne.s32.totalorder %s236, %s237
      %p248 = scmp.eq.s32.totalorder %s22, 0
      %p249 = por %p247, %p248
      %p250 = scmp.ne.s32.totalorder %s236, %s237
      %p251 = scmp.eq.s32.totalorder %s23, 3
      %p252 = por %p250, %p251
      %p254 = scmp.ne.s32.totalorder %s237, %s253
      %p255 = scmp.eq.s32.totalorder %s23, 0
      %p256 = por %p254, %p255
      %p257 = scmp.le.s32.totalorder 1, %s17
      %p258 = scmp.lt.s32.totalorder %s17, 5
      %p259 = pnand %p257, %p258
      %p260 = pneg %p259
      // Predicated region
      $region9: #{cost_volume_pallas.1} parent=5 // pred_check
        _
      $region10: #{cost_volume_pallas.1} parent=5 // pred_check_branch
        %262 = sbr.rel (%p259) target = $region12
      $region11: #{cost_volume_pallas.1} parent=5 // pred_region
        %s263 = ssub.s32 %s17, 1
        // Predicated region
        $region13: #{cost_volume_pallas.1} parent=11 // pred_check
          %p264 = pneg %p158
        $region14: #{cost_volume_pallas.1} parent=11 // pred_check_branch
          %266 = sbr.rel (%p264) target = $region16
        $region15: #{cost_volume_pallas.1} parent=11 // pred_region
          _
        $region16: #{cost_volume_pallas.1} parent=11 // pred_fallthru
          _
        // Predicated region
        $region17: #{cost_volume_pallas.1} parent=11 // pred_check
          %p267 = pneg %p179
        $region18: #{cost_volume_pallas.1} parent=11 // pred_check_branch
          %269 = sbr.rel (%p267) target = $region20
        $region19: #{cost_volume_pallas.1} parent=11 // pred_region
          _
        $region20: #{cost_volume_pallas.1} parent=11 // pred_fallthru
          _
        // Predicated region
        $region21: #{cost_volume_pallas.1} parent=11 // pred_check
          %p270 = pneg %p200
        $region22: #{cost_volume_pallas.1} parent=11 // pred_check_branch
          %272 = sbr.rel (%p270) target = $region24
        $region23: #{cost_volume_pallas.1} parent=11 // pred_region
          _
        $region24: #{cost_volume_pallas.1} parent=11 // pred_fallthru
          _
        // Predicated region
        $region25: #{cost_volume_pallas.1} parent=11 // pred_check
          %p273 = pneg %p221
        $region26: #{cost_volume_pallas.1} parent=11 // pred_check_branch
          %275 = sbr.rel (%p273) target = $region28
        $region27: #{cost_volume_pallas.1} parent=11 // pred_region
          _
        $region28: #{cost_volume_pallas.1} parent=11 // pred_fallthru
          _
      $region12: #{cost_volume_pallas.1} parent=5 // pred_fallthru
        _
      %p276 = scmp.lt.s32.totalorder %s17, 4
      // Predicated region
      $region29: #{cost_volume_pallas.1} parent=5 // pred_check
        %p277 = pneg %p276
      $region30: #{cost_volume_pallas.1} parent=5 // pred_check_branch
        %279 = sbr.rel (%p277) target = $region32
      $region31: #{cost_volume_pallas.1} parent=5 // pred_region
        // Predicated region
        $region33: #{cost_volume_pallas.1} parent=31 // pred_check
          %p280 = pneg %p51
        $region34: #{cost_volume_pallas.1} parent=31 // pred_check_branch
          %282 = sbr.rel (%p280) target = $region36
        $region35: #{cost_volume_pallas.1} parent=31 // pred_region
          %p283 = scmp.lt.s32.totalorder %s24, 1
          %s284 = scalar_select %p283, %s24, 1
          %p285 = scmp.lt.s32.totalorder %s25, 1
          %s286 = scalar_select %p285, %s25, 1
          %s287 = smul.addr %s284, 2
          %s288 = sadd.s32 %s286, %s287
          %s289 = smul.addr %s288, 4
          %s290 = scalar_lea.vmem %s0, %s289
        $region36: #{cost_volume_pallas.1} parent=31 // pred_fallthru
          _
        // Predicated region
        $region37: #{cost_volume_pallas.1} parent=31 // pred_check
          %p291 = pneg %p77
        $region38: #{cost_volume_pallas.1} parent=31 // pred_check_branch
          %293 = sbr.rel (%p291) target = $region40
        $region39: #{cost_volume_pallas.1} parent=31 // pred_region
          %p294 = scmp.lt.s32.totalorder %s24, 1
          %s295 = scalar_select %p294, %s24, 1
          %s296 = smul.addr %s295, 2
          %s297 = smul.addr %s296, 4
          %s298 = scalar_lea.vmem %s1, %s297
        $region40: #{cost_volume_pallas.1} parent=31 // pred_fallthru
          _
        // Predicated region
        $region41: #{cost_volume_pallas.1} parent=31 // pred_check
          %p299 = pneg %p105
        $region42: #{cost_volume_pallas.1} parent=31 // pred_check_branch
          %301 = sbr.rel (%p299) target = $region44
        $region43: #{cost_volume_pallas.1} parent=31 // pred_region
          %s302 = sand.u32 %s95, 1
          %s303 = sand.u32 %s95, 1
          %s304 = smul.addr %s303, 16
          %s305 = scalar_lea.vmem [#allocation2], %s304
          %s306 = smul.addr %s24, 4
          %s307 = sadd.s32 %s25, %s306
          %s308 = smul.addr %s307, 8
          %s309 = scalar_lea.vmem %s2, %s308
          // Predicated region
          $region45: #{cost_volume_pallas.1} parent=43 // pred_check
            _
          $region46: #{cost_volume_pallas.1} parent=43 // pred_check_branch
            %311 = sbr.rel (0) target = $region48
          $region47: #{cost_volume_pallas.1} parent=43 // pred_region
            // Predicated region
            $region49: #{cost_volume_pallas.1} parent=47 // pred_check
              _
            $region50: #{cost_volume_pallas.1} parent=47 // pred_check_branch
              %313 = sbr.rel (0) target = $region52
            $region51: #{cost_volume_pallas.1} parent=47 // pred_region
              // Predicated region
              $region64: #{cost_volume_pallas.1} parent=51 // pred_check
                _
              $region65: #{cost_volume_pallas.1} parent=51 // pred_check_branch
                %331 = sbr.rel (0) target = $region67
              $region66: #{cost_volume_pallas.1} parent=51 // pred_region
                loop: start=0, step=1, limit=1
                $region68: #{cost_volume_pallas.1} parent=66 // loop_pre_header
                  _
                $region69: #{cost_volume_pallas.1} parent=66 // loop_header
                  %s333 = sphi 0, %s337
                  %p334 = scmp.ge.s32.totalorder %s333, 1
                  %s338 = sphi %s309, %s309
                  %s339 = sphi %s305, %s305
                $region70: #{cost_volume_pallas.1} parent=66 // loop_header_branch
                  %336 = sbr.rel (%p334) target = $region74
                $region71: #{cost_volume_pallas.1} parent=66 // loop_body
                  %v340 = vld [vmem:[%s338] sm:$0xff]
                  %341 = vst [vmem:[%s339] sm:$0xff] %v340
                  %v342 = vld [vmem:[%s338 + $0x10] sm:$0xff]
                  %343 = vst [vmem:[%s339 + $0x8] sm:$0xff] %v342
                $region72: #{cost_volume_pallas.1} parent=66 // loop_footer
                  %s337 = sadd.s32 1, %s333
                $region73: #{cost_volume_pallas.1} parent=66 // loop_footer_branch
                  %332 = sbr.rel target = $region69
                $region74: #{cost_volume_pallas.1} parent=66 // loop_exit
                  _
              $region67: #{cost_volume_pallas.1} parent=51 // pred_fallthru
                _
              // Predicated region
              $region75: #{cost_volume_pallas.1} parent=51 // pred_check
                _
              $region76: #{cost_volume_pallas.1} parent=51 // pred_check_branch
                %345 = sbr.rel target = $region78
              $region77: #{cost_volume_pallas.1} parent=51 // pred_region
                _
              $region78: #{cost_volume_pallas.1} parent=51 // pred_fallthru
                _
            $region52: #{cost_volume_pallas.1} parent=47 // pred_fallthru
              _
            // Predicated region
            $region53: #{cost_volume_pallas.1} parent=47 // pred_check
              _
            $region54: #{cost_volume_pallas.1} parent=47 // pred_check_branch
              %315 = sbr.rel target = $region56
            $region55: #{cost_volume_pallas.1} parent=47 // pred_region
              %s317 = ssub.s32 256, 1
              loop: start=0, step=1, limit=1
              $region57: #{cost_volume_pallas.1} parent=55 // loop_pre_header
                _
              $region58: #{cost_volume_pallas.1} parent=55 // loop_header
                %s319 = sphi 0, %s323
                %p320 = scmp.ge.s32.totalorder %s319, 1
                %s324 = sphi %s309, %s309
                %s325 = sphi %s305, %s305
              $region59: #{cost_volume_pallas.1} parent=55 // loop_header_branch
                %322 = sbr.rel (%p320) target = $region63
              $region60: #{cost_volume_pallas.1} parent=55 // loop_body
                %v326 = vld [vmem:[%s324] sm:%s317]
                %327 = vst [vmem:[%s325] sm:%s317] %v326
                %v328 = vld [vmem:[%s324 + $0x10] sm:%s317]
                %329 = vst [vmem:[%s325 + $0x8] sm:%s317] %v328
              $region61: #{cost_volume_pallas.1} parent=55 // loop_footer
                %s323 = sadd.s32 1, %s319
              $region62: #{cost_volume_pallas.1} parent=55 // loop_footer_branch
                %318 = sbr.rel target = $region58
              $region63: #{cost_volume_pallas.1} parent=55 // loop_exit
                _
            $region56: #{cost_volume_pallas.1} parent=47 // pred_fallthru
              _
          $region48: #{cost_volume_pallas.1} parent=43 // pred_fallthru
            _
          %346 = vnop
        $region44: #{cost_volume_pallas.1} parent=31 // pred_fallthru
          _
        // Predicated region
        $region79: #{cost_volume_pallas.1} parent=31 // pred_check
          %p347 = pneg %p131
        $region80: #{cost_volume_pallas.1} parent=31 // pred_check_branch
          %349 = sbr.rel (%p347) target = $region82
        $region81: #{cost_volume_pallas.1} parent=31 // pred_region
          %p350 = scmp.lt.s32.totalorder %s24, 1
          %s351 = scalar_select %p350, %s24, 1
          %s352 = smul.addr %s351, 4
          %s353 = smul.addr %s352, 8
          %s354 = scalar_lea.vmem %s3, %s353
        $region82: #{cost_volume_pallas.1} parent=31 // pred_fallthru
          _
      $region32: #{cost_volume_pallas.1} parent=5 // pred_fallthru
        _
      %p355 = scmp.le.s32.totalorder 1, %s17
      %p356 = scmp.lt.s32.totalorder %s17, 5
      %p357 = pnand %p355, %p356
      %p358 = pneg %p357
      // Predicated region
      $region83: #{cost_volume_pallas.1} parent=5 // pred_check
        _
      $region84: #{cost_volume_pallas.1} parent=5 // pred_check_branch
        %360 = sbr.rel (%p357) target = $region86
      $region85: #{cost_volume_pallas.1} parent=5 // pred_region
        %s361 = ssub.s32 %s17, 1
        %s362 = sand.u32 %s98, 1
        %s363 = sand.u32 %s98, 1
        %s364 = smul.addr %s363, 16
        %s365 = scalar_lea.vmem [#allocation2], %s364
        // Predicated region
        $region87: #{cost_volume_pallas.1} parent=85 // pred_check
          %p366 = pneg %p111
        $region88: #{cost_volume_pallas.1} parent=85 // pred_check_branch
          %368 = sbr.rel (%p366) target = $region90
        $region89: #{cost_volume_pallas.1} parent=85 // pred_region
          _
        $region90: #{cost_volume_pallas.1} parent=85 // pred_fallthru
          _
        %p369 = scmp.lt.s32.totalorder %s26, 1
        %s370 = scalar_select %p369, %s26, 1
        %p371 = scmp.lt.s32.totalorder %s27, 1
        %s372 = scalar_select %p371, %s27, 1
        %s373 = smul.addr %s370, 2
        %s374 = sadd.s32 %s372, %s373
        %s375 = smul.addr %s374, 4
        %s376 = scalar_lea.vmem %s0, %s375
        %p377 = pneg %p57
        %p378 = pneg %p54
        %p379 = scmp.lt.s32.totalorder %s26, 1
        %s380 = scalar_select %p379, %s26, 1
        %s381 = smul.addr %s380, 2
        %s382 = smul.addr %s381, 4
        %s383 = scalar_lea.vmem %s1, %s382
        %p384 = pneg %p83
        %p385 = pneg %p80
        %s386 = sand.u32 %s98, 1
        %s387 = sand.u32 %s98, 1
        %s388 = smul.addr %s387, 16
        %s389 = scalar_lea.vmem [#allocation2], %s388
        %p390 = pneg %p111
        %p391 = pneg %p108
        %p392 = scmp.lt.s32.totalorder %s26, 1
        %s393 = scalar_select %p392, %s26, 1
        %s394 = smul.addr %s393, 4
        %s395 = smul.addr %s394, 8
        %s396 = scalar_lea.vmem %s3, %s395
        %p397 = pneg %p137
        %p398 = pneg %p134
        %p399 = pneg %p158
        %p400 = pneg %p155
        %p401 = pneg %p179
        %p402 = pneg %p176
        %p403 = pneg %p200
        %p404 = pneg %p197
        %p405 = pneg %p221
        %p406 = pneg %p218
        %p407 = pneg %p249
        %p408 = pneg %p246
        %s409 = sand.u32 %s236, 1
        %s410 = scalar_lea.sflag [#allocation4], %s409
        %s411 = sand.u32 %s236, 1
        %s412 = smul.addr %s411, 32
        %s413 = scalar_lea.vmem [#allocation3], %s412
        %p414 = scmp.lt.s32.totalorder %s26, 1
        %s415 = scalar_select %p414, %s26, 1
        %p416 = scmp.lt.s32.totalorder %s27, 1
        %s417 = scalar_select %p416, %s27, 1
        %s418 = smul.addr %s415, 2
        %s419 = sadd.s32 %s417, %s418
        %s420 = smul.addr %s419, 4
        %s421 = scalar_lea.vmem %s0, %s420
        %p422 = scmp.lt.s32.totalorder %s26, 1
        %s423 = scalar_select %p422, %s26, 1
        %s424 = smul.addr %s423, 2
        %s425 = smul.addr %s424, 4
        %s426 = scalar_lea.vmem %s1, %s425
        %p427 = scmp.lt.s32.totalorder %s26, 1
        %s428 = scalar_select %p427, %s26, 1
        %s429 = smul.addr %s428, 4
        %s430 = smul.addr %s429, 8
        %s431 = scalar_lea.vmem %s3, %s430
        %v432 = vld [vmem:[%s421] sm:$0x7]
        %v433 = vld [vmem:[%s426] sm:$0x77]
        %v434 = vld [vmem:[%s365] sm:$0xff]
        %v435 = vld [vmem:[%s365 + $0x8] sm:$0xff]
        %v436 = vld [vmem:[%s431] sm:$0xff]
        %v437 = vld [vmem:[%s431 + $0x8] sm:$0xff]
        %v438 = vld [vmem:[%s431 + $0x10] sm:$0xff]
        %v439 = vld [vmem:[%s431 + $0x18] sm:$0xff]
        %v440 = vmul.f32 %v432, %v432
        %vm441 = vcmask 1042432
        %v442 = vsel %vm441, %v440, 0.0
        %v443 = vrot.slane %v442, 4
        %v444 = vadd.f32 %v442, %v443
        %v445 = vrot.slane %v444, 2
        %v446 = vadd.f32 %v444, %v445
        %v447 = vrot.slane %v446, 1
        %v448 = vadd.f32 %v446, %v447
        %v449 = vmul.f32 %v433, %v433
        %451 = vst [vmem:[#allocation1] ss:$2 sm:$0xff] %v449
        %v452 = vld.sshfl [vmem:[#allocation1] sm:$0xff pattern:$0x75316420]
        %v453 = vld.sshfl [vmem:[#allocation1 + $0x8] sm:$0xff pattern:$0x75316420]
        %v456 = vsel %vm441, %v452, 0.0
        %v457 = vrot.slane %v456, 4
        %v458 = vadd.f32 %v456, %v457
        %v459 = vrot.slane %v458, 2
        %v460 = vadd.f32 %v458, %v459
        %v461 = vrot.slane %v460, 1
        %v462 = vadd.f32 %v460, %v461
        %v463 = vsel %vm441, %v453, 0.0
        %v464 = vrot.slane %v463, 4
        %v465 = vadd.f32 %v463, %v464
        %v466 = vrot.slane %v465, 2
        %v467 = vadd.f32 %v465, %v466
        %v468 = vrot.slane %v467, 1
        %v469 = vadd.f32 %v467, %v468
        %v470 = vmul.f32 %v433, -2.0
        %472 = vst [vmem:[#allocation1] ss:$2 sm:$0xff] %v470
        %v473 = vld.sshfl [vmem:[#allocation1] sm:$0xff pattern:$0x75316420]
        %v474 = vld.sshfl [vmem:[#allocation1 + $0x8] sm:$0xff pattern:$0x75316420]
        %v477 = vsel %vm441, %v473, %v462
        %v478 = vsel %vm441, %v474, %v469
        %v479 = vsel %vm441, %v432, 1.0
        %480 = vxpose.xlu0.b32.start [1/16] %v477, 128
        %481 = vxpose.xlu0.b32.cont [2/16] 0.0, 128
        %482 = vxpose.xlu0.b32.cont [3/16] 0.0, 128
        %483 = vxpose.xlu0.b32.cont [4/16] 0.0, 128
        %484 = vxpose.xlu0.b32.cont [5/16] 0.0, 128
        %485 = vxpose.xlu0.b32.cont [6/16] 0.0, 128
        %486 = vxpose.xlu0.b32.cont [7/16] 0.0, 128
        %487 = vxpose.xlu0.b32.cont [8/16] 0.0, 128
        %488 = vxpose.xlu0.b32.cont [9/16] 0.0, 128
        %489 = vxpose.xlu0.b32.cont [10/16] 0.0, 128
        %490 = vxpose.xlu0.b32.cont [11/16] 0.0, 128
        %491 = vxpose.xlu0.b32.cont [12/16] 0.0, 128
        %492 = vxpose.xlu0.b32.cont [13/16] 0.0, 128
        %493 = vxpose.xlu0.b32.cont [14/16] 0.0, 128
        %494 = vxpose.xlu0.b32.cont [15/16] 0.0, 128
        %495 = vxpose.xlu0.b32.end [16/16] 0.0, 128
        %v496 = vpop.trf.xlu0
        %v497 = vpop.trf.xlu0
        %v498 = vpop.trf.xlu0
        %v499 = vpop.trf.xlu0
        %v500 = vpop.trf.xlu0
        %v501 = vpop.trf.xlu0
        %v502 = vpop.trf.xlu0
        %v503 = vpop.trf.xlu0
        %v504 = vpop.trf.xlu0
        %v505 = vpop.trf.xlu0
        %v506 = vpop.trf.xlu0
        %v507 = vpop.trf.xlu0
        %v508 = vpop.trf.xlu0
        %v509 = vpop.trf.xlu0
        %v510 = vpop.trf.xlu0
        %v511 = vpop.trf.xlu0
        %512 = vxpose.xlu0.b32.start [1/16] %v478, 128
        %513 = vxpose.xlu0.b32.cont [2/16] 0.0, 128
        %514 = vxpose.xlu0.b32.cont [3/16] 0.0, 128
        %515 = vxpose.xlu0.b32.cont [4/16] 0.0, 128
        %516 = vxpose.xlu0.b32.cont [5/16] 0.0, 128
        %517 = vxpose.xlu0.b32.cont [6/16] 0.0, 128
        %518 = vxpose.xlu0.b32.cont [7/16] 0.0, 128
        %519 = vxpose.xlu0.b32.cont [8/16] 0.0, 128
        %520 = vxpose.xlu0.b32.cont [9/16] 0.0, 128
        %521 = vxpose.xlu0.b32.cont [10/16] 0.0, 128
        %522 = vxpose.xlu0.b32.cont [11/16] 0.0, 128
        %523 = vxpose.xlu0.b32.cont [12/16] 0.0, 128
        %524 = vxpose.xlu0.b32.cont [13/16] 0.0, 128
        %525 = vxpose.xlu0.b32.cont [14/16] 0.0, 128
        %526 = vxpose.xlu0.b32.cont [15/16] 0.0, 128
        %527 = vxpose.xlu0.b32.end [16/16] 0.0, 128
        %v528 = vpop.trf.xlu0
        %v529 = vpop.trf.xlu0
        %v530 = vpop.trf.xlu0
        %v531 = vpop.trf.xlu0
        %v532 = vpop.trf.xlu0
        %v533 = vpop.trf.xlu0
        %v534 = vpop.trf.xlu0
        %v535 = vpop.trf.xlu0
        %v536 = vpop.trf.xlu0
        %v537 = vpop.trf.xlu0
        %v538 = vpop.trf.xlu0
        %v539 = vpop.trf.xlu0
        %v540 = vpop.trf.xlu0
        %v541 = vpop.trf.xlu0
        %v542 = vpop.trf.xlu0
        %v543 = vpop.trf.xlu0
        %vm544 = vcmask 31744
        %v546 = vsel %vm544, %v496, 0
        %v549 = vsel %vm544, %v497, 0
        %v552 = vsel %vm544, %v498, 0
        %v555 = vsel %vm544, %v499, 0
        %v558 = vsel %vm544, %v500, 0
        %v561 = vsel %vm544, %v501, 0
        %v564 = vsel %vm544, %v502, 0
        %v567 = vsel %vm544, %v503, 0
        %v570 = vsel %vm544, %v504, 0
        %v573 = vsel %vm544, %v505, 0
        %v576 = vsel %vm544, %v506, 0
        %v579 = vsel %vm544, %v507, 0
        %v582 = vsel %vm544, %v508, 0
        %v585 = vsel %vm544, %v509, 0
        %v588 = vsel %vm544, %v510, 0
        %v591 = vsel %vm544, %v511, 0
        %v594 = vsel %vm544, %v528, 0
        %v597 = vsel %vm544, %v529, 0
        %v600 = vsel %vm544, %v530, 0
        %v603 = vsel %vm544, %v531, 0
        %v606 = vsel %vm544, %v532, 0
        %v609 = vsel %vm544, %v533, 0
        %v612 = vsel %vm544, %v534, 0
        %v615 = vsel %vm544, %v535, 0
        %v618 = vsel %vm544, %v536, 0
        %v621 = vsel %vm544, %v537, 0
        %v624 = vsel %vm544, %v538, 0
        %v627 = vsel %vm544, %v539, 0
        %v630 = vsel %vm544, %v540, 0
        %v633 = vsel %vm544, %v541, 0
        %v636 = vsel %vm544, %v542, 0
        %v639 = vsel %vm544, %v543, 0
        %vm641 = vcmask 1043456
        %v643 = vsel %vm641, %v479, 0
        %645 = vmatpush.msra.mxu0 0.0
        %646 = vmatpush.msra.mxu0 0.0
        %647 = vmatpush.msra.mxu0 0.0
        %648 = vmatpush.msra.mxu0 0.0
        %649 = vmatpush.msra.mxu0 0.0
        %650 = vmatpush.msra.mxu0 0.0
        %651 = vmatpush.msra.mxu0 0.0
        %652 = vmatpush.msra.mxu0 0.0
        %653 = vmatpush.msra.mxu0 0.0
        %654 = vmatpush.msra.mxu0 0.0
        %655 = vmatpush.msra.mxu0 0.0
        %656 = vmatpush.msra.mxu0 0.0
        %657 = vmatpush.msra.mxu0 0.0
        %658 = vmatpush.msra.mxu0 0.0
        %659 = vmatpush.msra.mxu0 0.0
        %660 = vmatpush.msra.mxu0 %v643
        %661 = vmatmul.f32.gmra.mxu0 %v546
        %v662 = vpop.f32.mrf.mxu0
        %v663 = vadd.f32 0.0, %v662
        %664 = vmatmul.f32.gmra.mxu0 %v549
        %v665 = vpop.f32.mrf.mxu0
        %v666 = vadd.f32 0.0, %v665
        %667 = vmatmul.f32.gmra.mxu0 %v552
        %v668 = vpop.f32.mrf.mxu0
        %v669 = vadd.f32 0.0, %v668
        %670 = vmatmul.f32.gmra.mxu0 %v555
        %v671 = vpop.f32.mrf.mxu0
        %v672 = vadd.f32 0.0, %v671
        %673 = vmatmul.f32.gmra.mxu0 %v558
        %v674 = vpop.f32.mrf.mxu0
        %v675 = vadd.f32 0.0, %v674
        %676 = vmatmul.f32.gmra.mxu0 %v561
        %v677 = vpop.f32.mrf.mxu0
        %v678 = vadd.f32 0.0, %v677
        %679 = vmatmul.f32.gmra.mxu0 %v564
        %v680 = vpop.f32.mrf.mxu0
        %v681 = vadd.f32 0.0, %v680
        %682 = vmatmul.f32.gmra.mxu0 %v567
        %v683 = vpop.f32.mrf.mxu0
        %v684 = vadd.f32 0.0, %v683
        %685 = vmatmul.f32.gmra.mxu0 %v570
        %v686 = vpop.f32.mrf.mxu0
        %v687 = vadd.f32 0.0, %v686
        %688 = vmatmul.f32.gmra.mxu0 %v573
        %v689 = vpop.f32.mrf.mxu0
        %v690 = vadd.f32 0.0, %v689
        %691 = vmatmul.f32.gmra.mxu0 %v576
        %v692 = vpop.f32.mrf.mxu0
        %v693 = vadd.f32 0.0, %v692
        %694 = vmatmul.f32.gmra.mxu0 %v579
        %v695 = vpop.f32.mrf.mxu0
        %v696 = vadd.f32 0.0, %v695
        %697 = vmatmul.f32.gmra.mxu0 %v582
        %v698 = vpop.f32.mrf.mxu0
        %v699 = vadd.f32 0.0, %v698
        %700 = vmatmul.f32.gmra.mxu0 %v585
        %v701 = vpop.f32.mrf.mxu0
        %v702 = vadd.f32 0.0, %v701
        %703 = vmatmul.f32.gmra.mxu0 %v588
        %v704 = vpop.f32.mrf.mxu0
        %v705 = vadd.f32 0.0, %v704
        %706 = vmatmul.f32.gmra.mxu0 %v591
        %v707 = vpop.f32.mrf.mxu0
        %v708 = vadd.f32 0.0, %v707
        %709 = vmatmul.f32.gmra.mxu0 %v594
        %v710 = vpop.f32.mrf.mxu0
        %v711 = vadd.f32 0.0, %v710
        %712 = vmatmul.f32.gmra.mxu0 %v597
        %v713 = vpop.f32.mrf.mxu0
        %v714 = vadd.f32 0.0, %v713
        %715 = vmatmul.f32.gmra.mxu0 %v600
        %v716 = vpop.f32.mrf.mxu0
        %v717 = vadd.f32 0.0, %v716
        %718 = vmatmul.f32.gmra.mxu0 %v603
        %v719 = vpop.f32.mrf.mxu0
        %v720 = vadd.f32 0.0, %v719
        %721 = vmatmul.f32.gmra.mxu0 %v606
        %v722 = vpop.f32.mrf.mxu0
        %v723 = vadd.f32 0.0, %v722
        %724 = vmatmul.f32.gmra.mxu0 %v609
        %v725 = vpop.f32.mrf.mxu0
        %v726 = vadd.f32 0.0, %v725
        %727 = vmatmul.f32.gmra.mxu0 %v612
        %v728 = vpop.f32.mrf.mxu0
        %v729 = vadd.f32 0.0, %v728
        %730 = vmatmul.f32.gmra.mxu0 %v615
        %v731 = vpop.f32.mrf.mxu0
        %v732 = vadd.f32 0.0, %v731
        %733 = vmatmul.f32.gmra.mxu0 %v618
        %v734 = vpop.f32.mrf.mxu0
        %v735 = vadd.f32 0.0, %v734
        %736 = vmatmul.f32.gmra.mxu0 %v621
        %v737 = vpop.f32.mrf.mxu0
        %v738 = vadd.f32 0.0, %v737
        %739 = vmatmul.f32.gmra.mxu0 %v624
        %v740 = vpop.f32.mrf.mxu0
        %v741 = vadd.f32 0.0, %v740
        %742 = vmatmul.f32.gmra.mxu0 %v627
        %v743 = vpop.f32.mrf.mxu0
        %v744 = vadd.f32 0.0, %v743
        %745 = vmatmul.f32.gmra.mxu0 %v630
        %v746 = vpop.f32.mrf.mxu0
        %v747 = vadd.f32 0.0, %v746
        %748 = vmatmul.f32.gmra.mxu0 %v633
        %v749 = vpop.f32.mrf.mxu0
        %v750 = vadd.f32 0.0, %v749
        %751 = vmatmul.f32.gmra.mxu0 %v636
        %v752 = vpop.f32.mrf.mxu0
        %v753 = vadd.f32 0.0, %v752
        %754 = vmatmul.f32.gmra.mxu0 %v639
        %v755 = vpop.f32.mrf.mxu0
        %v756 = vadd.f32 0.0, %v755
        %757 = vdwg.mxu0
        %v758 = vlaneseq
        %v759 = vshrl.u32 %v758, 7
        %v760 = vadd.s32 %v759, 8
        %v761 = vadd.s32 %v759, 16
        %v762 = vadd.s32 %v759, 24
        %v763 = vadd.s32 %v759, 32
        %v764 = vadd.s32 %v759, 40
        %v765 = vadd.s32 %v759, 48
        %v766 = vadd.s32 %v759, 56
        %v767 = vadd.s32 %v759, 64
        %v768 = vadd.s32 %v759, 72
        %v769 = vadd.s32 %v759, 80
        %v770 = vadd.s32 %v759, 88
        %v771 = vadd.s32 %v759, 96
        %v772 = vadd.s32 %v759, 104
        %v773 = vadd.s32 %v759, 112
        %v774 = vadd.s32 %v759, 120
        %v775 = vadd.s32 %v759, 128
        %v776 = vadd.s32 %v759, 136
        %v777 = vadd.s32 %v759, 144
        %v778 = vadd.s32 %v759, 152
        %v779 = vadd.s32 %v759, 160
        %v780 = vadd.s32 %v759, 168
        %v781 = vadd.s32 %v759, 176
        %v782 = vadd.s32 %v759, 184
        %v783 = vadd.s32 %v759, 192
        %v784 = vadd.s32 %v759, 200
        %v785 = vadd.s32 %v759, 208
        %v786 = vadd.s32 %v759, 216
        %v787 = vadd.s32 %v759, 224
        %v788 = vadd.s32 %v759, 232
        %v789 = vadd.s32 %v759, 240
        %v790 = vadd.s32 %v759, 248
        %v791 = vcvt.s32.f32 %v759
        %v792 = vcvt.s32.f32 %v760
        %v793 = vcvt.s32.f32 %v761
        %v794 = vcvt.s32.f32 %v762
        %v795 = vcvt.s32.f32 %v763
        %v796 = vcvt.s32.f32 %v764
        %v797 = vcvt.s32.f32 %v765
        %v798 = vcvt.s32.f32 %v766
        %v799 = vcvt.s32.f32 %v767
        %v800 = vcvt.s32.f32 %v768
        %v801 = vcvt.s32.f32 %v769
        %v802 = vcvt.s32.f32 %v770
        %v803 = vcvt.s32.f32 %v771
        %v804 = vcvt.s32.f32 %v772
        %v805 = vcvt.s32.f32 %v773
        %v806 = vcvt.s32.f32 %v774
        %v807 = vcvt.s32.f32 %v775
        %v808 = vcvt.s32.f32 %v776
        %v809 = vcvt.s32.f32 %v777
        %v810 = vcvt.s32.f32 %v778
        %v811 = vcvt.s32.f32 %v779
        %v812 = vcvt.s32.f32 %v780
        %v813 = vcvt.s32.f32 %v781
        %v814 = vcvt.s32.f32 %v782
        %v815 = vcvt.s32.f32 %v783
        %v816 = vcvt.s32.f32 %v784
        %v817 = vcvt.s32.f32 %v785
        %v818 = vcvt.s32.f32 %v786
        %v819 = vcvt.s32.f32 %v787
        %v820 = vcvt.s32.f32 %v788
        %v821 = vcvt.s32.f32 %v789
        %v822 = vcvt.s32.f32 %v790
        %v823 = vld [vmem:[%s4] sm:$0xff]
        %v824 = vld [vmem:[%s4 + $0x8] sm:$0xff]
        %v825 = vld [vmem:[%s4 + $0x10] sm:$0xff]
        %v826 = vld [vmem:[%s4 + $0x18] sm:$0xff]
        %v827 = vld [vmem:[%s5] sm:$0xff]
        %v828 = vld [vmem:[%s5 + $0x8] sm:$0xff]
        %v829 = vld [vmem:[%s5 + $0x10] sm:$0xff]
        %v830 = vld [vmem:[%s5 + $0x18] sm:$0xff]
        %835 = vrot.lane.b32.xlu0 %v823, 96
        %v836 = vpop.permute.xlu0 %835
        %837 = vrot.lane.b32.xlu0 %v824, 96
        %v838 = vpop.permute.xlu0 %837
        %839 = vrot.lane.b32.xlu0 %v825, 96
        %v840 = vpop.permute.xlu0 %839
        %841 = vrot.lane.b32.xlu0 %v826, 96
        %v842 = vpop.permute.xlu0 %841
        %844 = vst [vmem:[#allocation1] ss:$2 sm:$0xff] %v433
        %v845 = vld.sshfl [vmem:[#allocation1] sm:$0xff pattern:$0x75316420]
        %v846 = vld.sshfl [vmem:[#allocation1 + $0x8] sm:$0xff pattern:$0x75316420]
        %vm847 = vcmask 23552
        %v848 = vsel %vm847, %v836, 0
        %v850 = vsel %vm847, %v838, 0
        %v852 = vsel %vm847, %v840, 0
        %v854 = vsel %vm847, %v842, 0
        %v856 = vsel %vm441, %v845, 0
        %v858 = vsel %vm441, %v846, 0
        %860 = vmatpush.msra.mxu0 0.0
        %861 = vmatpush.msra.mxu0 0.0
        %862 = vmatpush.msra.mxu0 0.0
        %863 = vmatpush.msra.mxu0 0.0
        %864 = vmatpush.msra.mxu0 0.0
        %865 = vmatpush.msra.mxu0 0.0
        %866 = vmatpush.msra.mxu0 0.0
        %867 = vmatpush.msra.mxu0 0.0
        %868 = vmatpush.msra.mxu0 0.0
        %869 = vmatpush.msra.mxu0 0.0
        %870 = vmatpush.msra.mxu0 0.0
        %871 = vmatpush.msra.mxu0 0.0
        %872 = vmatpush.msra.mxu0 0.0
        %873 = vmatpush.msra.mxu0 0.0
        %874 = vmatpush.msra.mxu0 0.0
        %875 = vmatpush.msra.mxu0 %v856
        %876 = vmatmul.f32.gmra.mxu0 %v848
        %v877 = vpop.f32.mrf.mxu0
        %v878 = vadd.f32 0.0, %v877
        %879 = vmatmul.f32.gmra.mxu0 %v850
        %v880 = vpop.f32.mrf.mxu0
        %v881 = vadd.f32 0.0, %v880
        %882 = vmatmul.f32.gmra.mxu0 %v852
        %v883 = vpop.f32.mrf.mxu0
        %v884 = vadd.f32 0.0, %v883
        %885 = vmatmul.f32.gmra.mxu0 %v854
        %v886 = vpop.f32.mrf.mxu0
        %v887 = vadd.f32 0.0, %v886
        %888 = vdwg.mxu0
        %889 = vmatpush.msra.mxu0 0.0
        %890 = vmatpush.msra.mxu0 0.0
        %891 = vmatpush.msra.mxu0 0.0
        %892 = vmatpush.msra.mxu0 0.0
        %893 = vmatpush.msra.mxu0 0.0
        %894 = vmatpush.msra.mxu0 0.0
        %895 = vmatpush.msra.mxu0 0.0
        %896 = vmatpush.msra.mxu0 0.0
        %897 = vmatpush.msra.mxu0 0.0
        %898 = vmatpush.msra.mxu0 0.0
        %899 = vmatpush.msra.mxu0 0.0
        %900 = vmatpush.msra.mxu0 0.0
        %901 = vmatpush.msra.mxu0 0.0
        %902 = vmatpush.msra.mxu0 0.0
        %903 = vmatpush.msra.mxu0 0.0
        %904 = vmatpush.msra.mxu0 %v858
        %905 = vmatmul.f32.gmra.mxu0 %v848
        %v906 = vpop.f32.mrf.mxu0
        %v907 = vadd.f32 0.0, %v906
        %908 = vmatmul.f32.gmra.mxu0 %v850
        %v909 = vpop.f32.mrf.mxu0
        %v910 = vadd.f32 0.0, %v909
        %911 = vmatmul.f32.gmra.mxu0 %v852
        %v912 = vpop.f32.mrf.mxu0
        %v913 = vadd.f32 0.0, %v912
        %914 = vmatmul.f32.gmra.mxu0 %v854
        %v915 = vpop.f32.mrf.mxu0
        %v916 = vadd.f32 0.0, %v915
        %917 = vdwg.mxu0
        %918 = vrot.lane.b32.xlu0 %v823, 112
        %v919 = vpop.permute.xlu0 %918
        %920 = vrot.lane.b32.xlu0 %v824, 112
        %v921 = vpop.permute.xlu0 %920
        %922 = vrot.lane.b32.xlu0 %v825, 112
        %v923 = vpop.permute.xlu0 %922
        %924 = vrot.lane.b32.xlu0 %v826, 112
        %v925 = vpop.permute.xlu0 %924
        %vm926 = vcmask 130048
        %v927 = vsel %vm926, %v919, 0
        %v929 = vsel %vm926, %v921, 0
        %v931 = vsel %vm926, %v923, 0
        %v933 = vsel %vm926, %v925, 0
        %935 = vmatpush.msra.mxu0 0.0
        %936 = vmatpush.msra.mxu0 0.0
        %937 = vmatpush.msra.mxu0 0.0
        %938 = vmatpush.msra.mxu0 0.0
        %939 = vmatpush.msra.mxu0 0.0
        %940 = vmatpush.msra.mxu0 0.0
        %941 = vmatpush.msra.mxu0 0.0
        %942 = vmatpush.msra.mxu0 0.0
        %943 = vmatpush.msra.mxu0 0.0
        %944 = vmatpush.msra.mxu0 0.0
        %945 = vmatpush.msra.mxu0 0.0
        %946 = vmatpush.msra.mxu0 0.0
        %947 = vmatpush.msra.mxu0 0.0
        %948 = vmatpush.msra.mxu0 0.0
        %949 = vmatpush.msra.mxu0 %v438
        %950 = vmatpush.msra.mxu0 %v436
        %951 = vmatmul.f32.gmra.mxu0 %v927
        %v952 = vpop.f32.mrf.mxu0
        %v953 = vadd.f32 %v878, %v952
        %954 = vmatmul.f32.gmra.mxu0 %v929
        %v955 = vpop.f32.mrf.mxu0
        %v956 = vadd.f32 %v881, %v955
        %957 = vmatmul.f32.gmra.mxu0 %v931
        %v958 = vpop.f32.mrf.mxu0
        %v959 = vadd.f32 %v884, %v958
        %960 = vmatmul.f32.gmra.mxu0 %v933
        %v961 = vpop.f32.mrf.mxu0
        %v962 = vadd.f32 %v887, %v961
        %963 = vdwg.mxu0
        %964 = vmatpush.msra.mxu0 0.0
        %965 = vmatpush.msra.mxu0 0.0
        %966 = vmatpush.msra.mxu0 0.0
        %967 = vmatpush.msra.mxu0 0.0
        %968 = vmatpush.msra.mxu0 0.0
        %969 = vmatpush.msra.mxu0 0.0
        %970 = vmatpush.msra.mxu0 0.0
        %971 = vmatpush.msra.mxu0 0.0
        %972 = vmatpush.msra.mxu0 0.0
        %973 = vmatpush.msra.mxu0 0.0
        %974 = vmatpush.msra.mxu0 0.0
        %975 = vmatpush.msra.mxu0 0.0
        %976 = vmatpush.msra.mxu0 0.0
        %977 = vmatpush.msra.mxu0 0.0
        %978 = vmatpush.msra.mxu0 %v439
        %979 = vmatpush.msra.mxu0 %v437
        %980 = vmatmul.f32.gmra.mxu0 %v927
        %v981 = vpop.f32.mrf.mxu0
        %v982 = vadd.f32 %v907, %v981
        %983 = vmatmul.f32.gmra.mxu0 %v929
        %v984 = vpop.f32.mrf.mxu0
        %v985 = vadd.f32 %v910, %v984
        %986 = vmatmul.f32.gmra.mxu0 %v931
        %v987 = vpop.f32.mrf.mxu0
        %v988 = vadd.f32 %v913, %v987
        %989 = vmatmul.f32.gmra.mxu0 %v933
        %v990 = vpop.f32.mrf.mxu0
        %v991 = vadd.f32 %v916, %v990
        %992 = vdwg.mxu0
        %v993 = vsel %vm926, %v823, 0
        %v995 = vsel %vm926, %v824, 0
        %v997 = vsel %vm926, %v825, 0
        %v999 = vsel %vm926, %v826, 0
        %1001 = vmatpush.msra.mxu0 0.0
        %1002 = vmatpush.msra.mxu0 0.0
        %1003 = vmatpush.msra.mxu0 0.0
        %1004 = vmatpush.msra.mxu0 0.0
        %1005 = vmatpush.msra.mxu0 0.0
        %1006 = vmatpush.msra.mxu0 0.0
        %1007 = vmatpush.msra.mxu0 0.0
        %1008 = vmatpush.msra.mxu0 0.0
        %1009 = vmatpush.msra.mxu0 0.0
        %1010 = vmatpush.msra.mxu0 0.0
        %1011 = vmatpush.msra.mxu0 0.0
        %1012 = vmatpush.msra.mxu0 0.0
        %1013 = vmatpush.msra.mxu0 0.0
        %1014 = vmatpush.msra.mxu0 0.0
        %1015 = vmatpush.msra.mxu0 %v435
        %1016 = vmatpush.msra.mxu0 %v434
        %1017 = vmatmul.f32.gmra.mxu0 %v993
        %v1018 = vpop.f32.mrf.mxu0
        %v1019 = vadd.f32 0.0, %v1018
        %1020 = vmatmul.f32.gmra.mxu0 %v995
        %v1021 = vpop.f32.mrf.mxu0
        %v1022 = vadd.f32 0.0, %v1021
        %1023 = vmatmul.f32.gmra.mxu0 %v997
        %v1024 = vpop.f32.mrf.mxu0
        %v1025 = vadd.f32 0.0, %v1024
        %1026 = vmatmul.f32.gmra.mxu0 %v999
        %v1027 = vpop.f32.mrf.mxu0
        %v1028 = vadd.f32 0.0, %v1027
        %1029 = vdwg.mxu0
        %v1031 = vsel %vm441, %v432, 0
        %1033 = vmatpush.msra.mxu0 0.0
        %1034 = vmatpush.msra.mxu0 0.0
        %1035 = vmatpush.msra.mxu0 0.0
        %1036 = vmatpush.msra.mxu0 0.0
        %1037 = vmatpush.msra.mxu0 0.0
        %1038 = vmatpush.msra.mxu0 0.0
        %1039 = vmatpush.msra.mxu0 0.0
        %1040 = vmatpush.msra.mxu0 0.0
        %1041 = vmatpush.msra.mxu0 0.0
        %1042 = vmatpush.msra.mxu0 0.0
        %1043 = vmatpush.msra.mxu0 0.0
        %1044 = vmatpush.msra.mxu0 0.0
        %1045 = vmatpush.msra.mxu0 0.0
        %1046 = vmatpush.msra.mxu0 0.0
        %1047 = vmatpush.msra.mxu0 0.0
        %1048 = vmatpush.msra.mxu0 %v1031
        %1049 = vmatmul.f32.gmra.mxu0 %v848
        %v1050 = vpop.f32.mrf.mxu0
        %v1051 = vadd.f32 0.0, %v1050
        %1052 = vmatmul.f32.gmra.mxu0 %v850
        %v1053 = vpop.f32.mrf.mxu0
        %v1054 = vadd.f32 0.0, %v1053
        %1055 = vmatmul.f32.gmra.mxu0 %v852
        %v1056 = vpop.f32.mrf.mxu0
        %v1057 = vadd.f32 0.0, %v1056
        %1058 = vmatmul.f32.gmra.mxu0 %v854
        %v1059 = vpop.f32.mrf.mxu0
        %v1060 = vadd.f32 0.0, %v1059
        %1061 = vdwg.mxu0
        %v1062 = vsub.f32 %v1019, %v1051
        %v1063 = vsub.f32 %v1022, %v1054
        %v1064 = vsub.f32 %v1025, %v1057
        %v1065 = vsub.f32 %v1028, %v1060
        %1067 = vset.pattern.permute.xlu0 0
        %1068 = vperm.xlu0 %1067, %v827
        %v1069 = vpop.permute.xlu0 %1068
        %1072 = vset.pattern.permute.xlu0 0
        %1073 = vperm.xlu0 %1072, %v828
        %v1074 = vpop.permute.xlu0 %1073
        %1077 = vset.pattern.permute.xlu0 0
        %1078 = vperm.xlu0 %1077, %v829
        %v1079 = vpop.permute.xlu0 %1078
        %1082 = vset.pattern.permute.xlu0 0
        %1083 = vperm.xlu0 %1082, %v830
        %v1084 = vpop.permute.xlu0 %1083
        %v1086 = vadd.f32 %v1062, %v1069
        %v1087 = vadd.f32 %v1063, %v1074
        %v1088 = vadd.f32 %v1064, %v1079
        %v1089 = vadd.f32 %v1065, %v1084
        %v1090 = vmin.f32 %v663, %v675
        %v1091 = vmin.f32 %v666, %v678
        %v1092 = vmin.f32 %v669, %v681
        %v1093 = vmin.f32 %v672, %v684
        %v1094 = vmin.f32 %v1090, %v687
        %v1095 = vmin.f32 %v1091, %v690
        %v1096 = vmin.f32 %v1092, %v693
        %v1097 = vmin.f32 %v1093, %v696
        %v1098 = vmin.f32 %v1094, %v699
        %v1099 = vmin.f32 %v1095, %v702
        %v1100 = vmin.f32 %v1096, %v705
        %v1101 = vmin.f32 %v1097, %v708
        %v1102 = vmin.f32 %v1098, %v711
        %v1103 = vmin.f32 %v1099, %v714
        %v1104 = vmin.f32 %v1100, %v717
        %v1105 = vmin.f32 %v1101, %v720
        %v1106 = vmin.f32 %v1102, %v723
        %v1107 = vmin.f32 %v1103, %v726
        %v1108 = vmin.f32 %v1104, %v729
        %v1109 = vmin.f32 %v1105, %v732
        %v1110 = vmin.f32 %v1106, %v735
        %v1111 = vmin.f32 %v1107, %v738
        %v1112 = vmin.f32 %v1108, %v741
        %v1113 = vmin.f32 %v1109, %v744
        %v1114 = vmin.f32 %v1110, %v747
        %v1115 = vmin.f32 %v1111, %v750
        %v1116 = vmin.f32 %v1112, %v753
        %v1117 = vmin.f32 %v1113, %v756
        %v1118 = vmin.f32 %v1114, %v1115
        %v1119 = vmin.f32 %v1116, %v1117
        %v1120 = vmin.f32 %v1118, %v1119
        %v1121 = vrot.slane %v1120, 4
        %v1122 = vmin.f32 %v1120, %v1121
        %v1123 = vrot.slane %v1122, 2
        %v1124 = vmin.f32 %v1122, %v1123
        %v1125 = vrot.slane %v1124, 1
        %v1126 = vmin.f32 %v1124, %v1125
        %vm1127 = vcmp.le.f32.partialorder %v663, %v1126
        %vm1128 = vcmp.le.f32.partialorder %v666, %v1126
        %vm1129 = vcmp.le.f32.partialorder %v669, %v1126
        %vm1130 = vcmp.le.f32.partialorder %v672, %v1126
        %vm1131 = vcmp.le.f32.partialorder %v675, %v1126
        %vm1132 = vcmp.le.f32.partialorder %v678, %v1126
        %vm1133 = vcmp.le.f32.partialorder %v681, %v1126
        %vm1134 = vcmp.le.f32.partialorder %v684, %v1126
        %vm1135 = vcmp.le.f32.partialorder %v687, %v1126
        %vm1136 = vcmp.le.f32.partialorder %v690, %v1126
        %vm1137 = vcmp.le.f32.partialorder %v693, %v1126
        %vm1138 = vcmp.le.f32.partialorder %v696, %v1126
        %vm1139 = vcmp.le.f32.partialorder %v699, %v1126
        %vm1140 = vcmp.le.f32.partialorder %v702, %v1126
        %vm1141 = vcmp.le.f32.partialorder %v705, %v1126
        %vm1142 = vcmp.le.f32.partialorder %v708, %v1126
        %vm1143 = vcmp.le.f32.partialorder %v711, %v1126
        %vm1144 = vcmp.le.f32.partialorder %v714, %v1126
        %vm1145 = vcmp.le.f32.partialorder %v717, %v1126
        %vm1146 = vcmp.le.f32.partialorder %v720, %v1126
        %vm1147 = vcmp.le.f32.partialorder %v723, %v1126
        %vm1148 = vcmp.le.f32.partialorder %v726, %v1126
        %vm1149 = vcmp.le.f32.partialorder %v729, %v1126
        %vm1150 = vcmp.le.f32.partialorder %v732, %v1126
        %vm1151 = vcmp.le.f32.partialorder %v735, %v1126
        %vm1152 = vcmp.le.f32.partialorder %v738, %v1126
        %vm1153 = vcmp.le.f32.partialorder %v741, %v1126
        %vm1154 = vcmp.le.f32.partialorder %v744, %v1126
        %vm1155 = vcmp.le.f32.partialorder %v747, %v1126
        %vm1156 = vcmp.le.f32.partialorder %v750, %v1126
        %vm1157 = vcmp.le.f32.partialorder %v753, %v1126
        %vm1158 = vcmp.le.f32.partialorder %v756, %v1126
        %v1159 = vsel %vm1127, %v791, 256.0
        %v1160 = vsel %vm1128, %v792, 256.0
        %v1161 = vsel %vm1129, %v793, 256.0
        %v1162 = vsel %vm1130, %v794, 256.0
        %v1163 = vsel %vm1131, %v795, 256.0
        %v1164 = vsel %vm1132, %v796, 256.0
        %v1165 = vsel %vm1133, %v797, 256.0
        %v1166 = vsel %vm1134, %v798, 256.0
        %v1167 = vsel %vm1135, %v799, 256.0
        %v1168 = vsel %vm1136, %v800, 256.0
        %v1169 = vsel %vm1137, %v801, 256.0
        %v1170 = vsel %vm1138, %v802, 256.0
        %v1171 = vsel %vm1139, %v803, 256.0
        %v1172 = vsel %vm1140, %v804, 256.0
        %v1173 = vsel %vm1141, %v805, 256.0
        %v1174 = vsel %vm1142, %v806, 256.0
        %v1175 = vsel %vm1143, %v807, 256.0
        %v1176 = vsel %vm1144, %v808, 256.0
        %v1177 = vsel %vm1145, %v809, 256.0
        %v1178 = vsel %vm1146, %v810, 256.0
        %v1179 = vsel %vm1147, %v811, 256.0
        %v1180 = vsel %vm1148, %v812, 256.0
        %v1181 = vsel %vm1149, %v813, 256.0
        %v1182 = vsel %vm1150, %v814, 256.0
        %v1183 = vsel %vm1151, %v815, 256.0
        %v1184 = vsel %vm1152, %v816, 256.0
        %v1185 = vsel %vm1153, %v817, 256.0
        %v1186 = vsel %vm1154, %v818, 256.0
        %v1187 = vsel %vm1155, %v819, 256.0
        %v1188 = vsel %vm1156, %v820, 256.0
        %v1189 = vsel %vm1157, %v821, 256.0
        %v1190 = vsel %vm1158, %v822, 256.0
        %v1191 = vmin.f32 %v1159, %v1163
        %v1192 = vmin.f32 %v1160, %v1164
        %v1193 = vmin.f32 %v1161, %v1165
        %v1194 = vmin.f32 %v1162, %v1166
        %v1195 = vmin.f32 %v1191, %v1167
        %v1196 = vmin.f32 %v1192, %v1168
        %v1197 = vmin.f32 %v1193, %v1169
        %v1198 = vmin.f32 %v1194, %v1170
        %v1199 = vmin.f32 %v1195, %v1171
        %v1200 = vmin.f32 %v1196, %v1172
        %v1201 = vmin.f32 %v1197, %v1173
        %v1202 = vmin.f32 %v1198, %v1174
        %v1203 = vmin.f32 %v1199, %v1175
        %v1204 = vmin.f32 %v1200, %v1176
        %v1205 = vmin.f32 %v1201, %v1177
        %v1206 = vmin.f32 %v1202, %v1178
        %v1207 = vmin.f32 %v1203, %v1179
        %v1208 = vmin.f32 %v1204, %v1180
        %v1209 = vmin.f32 %v1205, %v1181
        %v1210 = vmin.f32 %v1206, %v1182
        %v1211 = vmin.f32 %v1207, %v1183
        %v1212 = vmin.f32 %v1208, %v1184
        %v1213 = vmin.f32 %v1209, %v1185
        %v1214 = vmin.f32 %v1210, %v1186
        %v1215 = vmin.f32 %v1211, %v1187
        %v1216 = vmin.f32 %v1212, %v1188
        %v1217 = vmin.f32 %v1213, %v1189
        %v1218 = vmin.f32 %v1214, %v1190
        %v1219 = vmin.f32 %v1215, %v1216
        %v1220 = vmin.f32 %v1217, %v1218
        %v1221 = vmin.f32 %v1219, %v1220
        %v1222 = vrot.slane %v1221, 4
        %v1223 = vmin.f32 %v1221, %v1222
        %v1224 = vrot.slane %v1223, 2
        %v1225 = vmin.f32 %v1223, %v1224
        %v1226 = vrot.slane %v1225, 1
        %v1227 = vmin.f32 %v1225, %v1226
        %vm1228 = vcmp.eq.f32.partialorder %v791, %v1227
        %vm1229 = vcmp.eq.f32.partialorder %v792, %v1227
        %vm1230 = vcmp.eq.f32.partialorder %v793, %v1227
        %vm1231 = vcmp.eq.f32.partialorder %v794, %v1227
        %vm1232 = vcmp.eq.f32.partialorder %v795, %v1227
        %vm1233 = vcmp.eq.f32.partialorder %v796, %v1227
        %vm1234 = vcmp.eq.f32.partialorder %v797, %v1227
        %vm1235 = vcmp.eq.f32.partialorder %v798, %v1227
        %vm1236 = vcmp.eq.f32.partialorder %v799, %v1227
        %vm1237 = vcmp.eq.f32.partialorder %v800, %v1227
        %vm1238 = vcmp.eq.f32.partialorder %v801, %v1227
        %vm1239 = vcmp.eq.f32.partialorder %v802, %v1227
        %vm1240 = vcmp.eq.f32.partialorder %v803, %v1227
        %vm1241 = vcmp.eq.f32.partialorder %v804, %v1227
        %vm1242 = vcmp.eq.f32.partialorder %v805, %v1227
        %vm1243 = vcmp.eq.f32.partialorder %v806, %v1227
        %vm1244 = vcmp.eq.f32.partialorder %v807, %v1227
        %vm1245 = vcmp.eq.f32.partialorder %v808, %v1227
        %vm1246 = vcmp.eq.f32.partialorder %v809, %v1227
        %vm1247 = vcmp.eq.f32.partialorder %v810, %v1227
        %vm1248 = vcmp.eq.f32.partialorder %v811, %v1227
        %vm1249 = vcmp.eq.f32.partialorder %v812, %v1227
        %vm1250 = vcmp.eq.f32.partialorder %v813, %v1227
        %vm1251 = vcmp.eq.f32.partialorder %v814, %v1227
        %vm1252 = vcmp.eq.f32.partialorder %v815, %v1227
        %vm1253 = vcmp.eq.f32.partialorder %v816, %v1227
        %vm1254 = vcmp.eq.f32.partialorder %v817, %v1227
        %vm1255 = vcmp.eq.f32.partialorder %v818, %v1227
        %vm1256 = vcmp.eq.f32.partialorder %v819, %v1227
        %vm1257 = vcmp.eq.f32.partialorder %v820, %v1227
        %vm1258 = vcmp.eq.f32.partialorder %v821, %v1227
        %vm1259 = vcmp.eq.f32.partialorder %v822, %v1227
        %v1260 = vsel %vm1228, 1, 0
        %v1261 = vsel %vm1229, 1, 0
        %v1262 = vsel %vm1230, 1, 0
        %v1263 = vsel %vm1231, 1, 0
        %v1264 = vsel %vm1232, 1, 0
        %v1265 = vsel %vm1233, 1, 0
        %v1266 = vsel %vm1234, 1, 0
        %v1267 = vsel %vm1235, 1, 0
        %v1268 = vsel %vm1236, 1, 0
        %v1269 = vsel %vm1237, 1, 0
        %v1270 = vsel %vm1238, 1, 0
        %v1271 = vsel %vm1239, 1, 0
        %v1272 = vsel %vm1240, 1, 0
        %v1273 = vsel %vm1241, 1, 0
        %v1274 = vsel %vm1242, 1, 0
        %v1275 = vsel %vm1243, 1, 0
        %v1276 = vsel %vm1244, 1, 0
        %v1277 = vsel %vm1245, 1, 0
        %v1278 = vsel %vm1246, 1, 0
        %v1279 = vsel %vm1247, 1, 0
        %v1280 = vsel %vm1248, 1, 0
        %v1281 = vsel %vm1249, 1, 0
        %v1282 = vsel %vm1250, 1, 0
        %v1283 = vsel %vm1251, 1, 0
        %v1284 = vsel %vm1252, 1, 0
        %v1285 = vsel %vm1253, 1, 0
        %v1286 = vsel %vm1254, 1, 0
        %v1287 = vsel %vm1255, 1, 0
        %v1288 = vsel %vm1256, 1, 0
        %v1289 = vsel %vm1257, 1, 0
        %v1290 = vsel %vm1258, 1, 0
        %v1291 = vsel %vm1259, 1, 0
        %v1292 = vcvt.s32.f32 %v1260
        %v1293 = vcvt.s32.f32 %v1261
        %v1294 = vcvt.s32.f32 %v1262
        %v1295 = vcvt.s32.f32 %v1263
        %v1296 = vcvt.s32.f32 %v1264
        %v1297 = vcvt.s32.f32 %v1265
        %v1298 = vcvt.s32.f32 %v1266
        %v1299 = vcvt.s32.f32 %v1267
        %v1300 = vcvt.s32.f32 %v1268
        %v1301 = vcvt.s32.f32 %v1269
        %v1302 = vcvt.s32.f32 %v1270
        %v1303 = vcvt.s32.f32 %v1271
        %v1304 = vcvt.s32.f32 %v1272
        %v1305 = vcvt.s32.f32 %v1273
        %v1306 = vcvt.s32.f32 %v1274
        %v1307 = vcvt.s32.f32 %v1275
        %v1308 = vcvt.s32.f32 %v1276
        %v1309 = vcvt.s32.f32 %v1277
        %v1310 = vcvt.s32.f32 %v1278
        %v1311 = vcvt.s32.f32 %v1279
        %v1312 = vcvt.s32.f32 %v1280
        %v1313 = vcvt.s32.f32 %v1281
        %v1314 = vcvt.s32.f32 %v1282
        %v1315 = vcvt.s32.f32 %v1283
        %v1316 = vcvt.s32.f32 %v1284
        %v1317 = vcvt.s32.f32 %v1285
        %v1318 = vcvt.s32.f32 %v1286
        %v1319 = vcvt.s32.f32 %v1287
        %v1320 = vcvt.s32.f32 %v1288
        %v1321 = vcvt.s32.f32 %v1289
        %v1322 = vcvt.s32.f32 %v1290
        %v1323 = vcvt.s32.f32 %v1291
        %v1324 = vadd.f32 %v1126, %v448
        %v1325 = vmax.f32 %v1324, 1e-20
        %v1326 = vrsqrt.pop %v1325
        %v1327 = vmul.f32 %v1326, %v1325
        %v1328 = vmul.f32 %v1327, %v1326
        %v1329 = vmul.f32 0.5, %v1328
        %v1330 = vsub.f32 1.5, %v1329
        %v1331 = vmul.f32 %v1326, %v1330
        %vm1332 = vweird.f32 %v1325
        %vm1333 = vweird.f32 %v1326
        %vm1334 = vmor %vm1332, %vm1333
        %v1335 = vsel %vm1334, %v1326, %v1331
        %1336 = vmatpush.msra.mxu0 %v1307
        %1337 = vmatpush.msra.mxu0 %v1306
        %1338 = vmatpush.msra.mxu0 %v1305
        %1339 = vmatpush.msra.mxu0 %v1304
        %1340 = vmatpush.msra.mxu0 %v1303
        %1341 = vmatpush.msra.mxu0 %v1302
        %1342 = vmatpush.msra.mxu0 %v1301
        %1343 = vmatpush.msra.mxu0 %v1300
        %1344 = vmatpush.msra.mxu0 %v1299
        %1345 = vmatpush.msra.mxu0 %v1298
        %1346 = vmatpush.msra.mxu0 %v1297
        %1347 = vmatpush.msra.mxu0 %v1296
        %1348 = vmatpush.msra.mxu0 %v1295
        %1349 = vmatpush.msra.mxu0 %v1294
        %1350 = vmatpush.msra.mxu0 %v1293
        %1351 = vmatpush.msra.mxu0 %v1292
        %1352 = vmatmul.f32.gmra.mxu0 %v953
        %v1353 = vpop.f32.mrf.mxu0
        %v1354 = vadd.f32 0.0, %v1353
        %1355 = vmatmul.f32.gmra.mxu0 %v956
        %v1356 = vpop.f32.mrf.mxu0
        %v1357 = vadd.f32 0.0, %v1356
        %1358 = vmatmul.f32.gmra.mxu0 %v959
        %v1359 = vpop.f32.mrf.mxu0
        %v1360 = vadd.f32 0.0, %v1359
        %1361 = vmatmul.f32.gmra.mxu0 %v962
        %v1362 = vpop.f32.mrf.mxu0
        %v1363 = vadd.f32 0.0, %v1362
        %1364 = vdwg.mxu0
        %1365 = vmatpush.msra.mxu0 %v1323
        %1366 = vmatpush.msra.mxu0 %v1322
        %1367 = vmatpush.msra.mxu0 %v1321
        %1368 = vmatpush.msra.mxu0 %v1320
        %1369 = vmatpush.msra.mxu0 %v1319
        %1370 = vmatpush.msra.mxu0 %v1318
        %1371 = vmatpush.msra.mxu0 %v1317
        %1372 = vmatpush.msra.mxu0 %v1316
        %1373 = vmatpush.msra.mxu0 %v1315
        %1374 = vmatpush.msra.mxu0 %v1314
        %1375 = vmatpush.msra.mxu0 %v1313
        %1376 = vmatpush.msra.mxu0 %v1312
        %1377 = vmatpush.msra.mxu0 %v1311
        %1378 = vmatpush.msra.mxu0 %v1310
        %1379 = vmatpush.msra.mxu0 %v1309
        %1380 = vmatpush.msra.mxu0 %v1308
        %1381 = vmatmul.f32.gmra.mxu0 %v982
        %v1382 = vpop.f32.mrf.mxu0
        %v1383 = vadd.f32 %v1354, %v1382
        %1384 = vmatmul.f32.gmra.mxu0 %v985
        %v1385 = vpop.f32.mrf.mxu0
        %v1386 = vadd.f32 %v1357, %v1385
        %1387 = vmatmul.f32.gmra.mxu0 %v988
        %v1388 = vpop.f32.mrf.mxu0
        %v1389 = vadd.f32 %v1360, %v1388
        %1390 = vmatmul.f32.gmra.mxu0 %v991
        %v1391 = vpop.f32.mrf.mxu0
        %v1392 = vadd.f32 %v1363, %v1391
        %1393 = vdwg.mxu0
        %v1394 = vadd.f32 %v1086, %v1383
        %v1395 = vadd.f32 %v1087, %v1386
        %v1396 = vadd.f32 %v1088, %v1389
        %v1397 = vadd.f32 %v1089, %v1392
        %v1398 = vmul.f32 %v1394, 0.1
        %v1399 = vmul.f32 %v1395, 0.1
        %v1400 = vmul.f32 %v1396, 0.1
        %v1401 = vmul.f32 %v1397, 0.1
        %v1402 = vmax.f32 %v1394, %v1398
        %v1403 = vmax.f32 %v1395, %v1399
        %v1404 = vmax.f32 %v1396, %v1400
        %v1405 = vmax.f32 %v1397, %v1401
        %v1406 = vld [vmem:[%s6] sm:$0xff]
        %v1407 = vld [vmem:[%s6 + $0x8] sm:$0xff]
        %v1408 = vld [vmem:[%s6 + $0x10] sm:$0xff]
        %v1409 = vld [vmem:[%s6 + $0x18] sm:$0xff]
        %v1410 = vld [vmem:[%s7] sm:$0xff]
        %v1411 = vld [vmem:[%s7 + $0x8] sm:$0xff]
        %v1412 = vld [vmem:[%s7 + $0x10] sm:$0xff]
        %v1413 = vld [vmem:[%s7 + $0x18] sm:$0xff]
        %1415 = vset.pattern.permute.xlu0 0
        %1416 = vperm.xlu0 %1415, %v1410
        %v1417 = vpop.permute.xlu0 %1416
        %1420 = vset.pattern.permute.xlu0 0
        %1421 = vperm.xlu0 %1420, %v1411
        %v1422 = vpop.permute.xlu0 %1421
        %1425 = vset.pattern.permute.xlu0 0
        %1426 = vperm.xlu0 %1425, %v1412
        %v1427 = vpop.permute.xlu0 %1426
        %1430 = vset.pattern.permute.xlu0 0
        %1431 = vperm.xlu0 %1430, %v1413
        %v1432 = vpop.permute.xlu0 %1431
        %vm1434 = vcmask 261120
        %v1436 = vsel %vm1434, %v1406, 0
        %v1439 = vsel %vm1434, %v1407, 0
        %v1442 = vsel %vm1434, %v1408, 0
        %v1445 = vsel %vm1434, %v1409, 0
        %1447 = vmatpush.msra.mxu0 0.0
        %1448 = vmatpush.msra.mxu0 0.0
        %1449 = vmatpush.msra.mxu0 0.0
        %1450 = vmatpush.msra.mxu0 0.0
        %1451 = vmatpush.msra.mxu0 0.0
        %1452 = vmatpush.msra.mxu0 0.0
        %1453 = vmatpush.msra.mxu0 0.0
        %1454 = vmatpush.msra.mxu0 0.0
        %1455 = vmatpush.msra.mxu0 0.0
        %1456 = vmatpush.msra.mxu0 0.0
        %1457 = vmatpush.msra.mxu0 0.0
        %1458 = vmatpush.msra.mxu0 0.0
        %1459 = vmatpush.msra.mxu0 %v1405
        %1460 = vmatpush.msra.mxu0 %v1404
        %1461 = vmatpush.msra.mxu0 %v1403
        %1462 = vmatpush.msra.mxu0 %v1402
        %1463 = vmatmul.f32.gmra.mxu0 %v1436
        %v1464 = vpop.f32.mrf.mxu0
        %v1465 = vadd.f32 %v1417, %v1464
        %1466 = vmatmul.f32.gmra.mxu0 %v1439
        %v1467 = vpop.f32.mrf.mxu0
        %v1468 = vadd.f32 %v1422, %v1467
        %1469 = vmatmul.f32.gmra.mxu0 %v1442
        %v1470 = vpop.f32.mrf.mxu0
        %v1471 = vadd.f32 %v1427, %v1470
        %1472 = vmatmul.f32.gmra.mxu0 %v1445
        %v1473 = vpop.f32.mrf.mxu0
        %v1474 = vadd.f32 %v1432, %v1473
        %1475 = vdwg.mxu0
        %v1476 = vmul.f32 %v1465, 0.1
        %v1477 = vmul.f32 %v1468, 0.1
        %v1478 = vmul.f32 %v1471, 0.1
        %v1479 = vmul.f32 %v1474, 0.1
        %v1480 = vmax.f32 %v1465, %v1476
        %v1481 = vmax.f32 %v1468, %v1477
        %v1482 = vmax.f32 %v1471, %v1478
        %v1483 = vmax.f32 %v1474, %v1479
        %v1484 = vmul.f32 %v1335, %v1480
        %v1485 = vmul.f32 %v1335, %v1481
        %v1486 = vmul.f32 %v1335, %v1482
        %v1487 = vmul.f32 %v1335, %v1483
        %v1488 = vsel %vm1228, 3e+38, %v663
        %v1489 = vsel %vm1229, 3e+38, %v666
        %v1490 = vsel %vm1230, 3e+38, %v669
        %v1491 = vsel %vm1231, 3e+38, %v672
        %v1492 = vsel %vm1232, 3e+38, %v675
        %v1493 = vsel %vm1233, 3e+38, %v678
        %v1494 = vsel %vm1234, 3e+38, %v681
        %v1495 = vsel %vm1235, 3e+38, %v684
        %v1496 = vsel %vm1236, 3e+38, %v687
        %v1497 = vsel %vm1237, 3e+38, %v690
        %v1498 = vsel %vm1238, 3e+38, %v693
        %v1499 = vsel %vm1239, 3e+38, %v696
        %v1500 = vsel %vm1240, 3e+38, %v699
        %v1501 = vsel %vm1241, 3e+38, %v702
        %v1502 = vsel %vm1242, 3e+38, %v705
        %v1503 = vsel %vm1243, 3e+38, %v708
        %v1504 = vsel %vm1244, 3e+38, %v711
        %v1505 = vsel %vm1245, 3e+38, %v714
        %v1506 = vsel %vm1246, 3e+38, %v717
        %v1507 = vsel %vm1247, 3e+38, %v720
        %v1508 = vsel %vm1248, 3e+38, %v723
        %v1509 = vsel %vm1249, 3e+38, %v726
        %v1510 = vsel %vm1250, 3e+38, %v729
        %v1511 = vsel %vm1251, 3e+38, %v732
        %v1512 = vsel %vm1252, 3e+38, %v735
        %v1513 = vsel %vm1253, 3e+38, %v738
        %v1514 = vsel %vm1254, 3e+38, %v741
        %v1515 = vsel %vm1255, 3e+38, %v744
        %v1516 = vsel %vm1256, 3e+38, %v747
        %v1517 = vsel %vm1257, 3e+38, %v750
        %v1518 = vsel %vm1258, 3e+38, %v753
        %v1519 = vsel %vm1259, 3e+38, %v756
        %v1520 = vmin.f32 %v1488, %v1492
        %v1521 = vmin.f32 %v1489, %v1493
        %v1522 = vmin.f32 %v1490, %v1494
        %v1523 = vmin.f32 %v1491, %v1495
        %v1524 = vmin.f32 %v1520, %v1496
        %v1525 = vmin.f32 %v1521, %v1497
        %v1526 = vmin.f32 %v1522, %v1498
        %v1527 = vmin.f32 %v1523, %v1499
        %v1528 = vmin.f32 %v1524, %v1500
        %v1529 = vmin.f32 %v1525, %v1501
        %v1530 = vmin.f32 %v1526, %v1502
        %v1531 = vmin.f32 %v1527, %v1503
        %v1532 = vmin.f32 %v1528, %v1504
        %v1533 = vmin.f32 %v1529, %v1505
        %v1534 = vmin.f32 %v1530, %v1506
        %v1535 = vmin.f32 %v1531, %v1507
        %v1536 = vmin.f32 %v1532, %v1508
        %v1537 = vmin.f32 %v1533, %v1509
        %v1538 = vmin.f32 %v1534, %v1510
        %v1539 = vmin.f32 %v1535, %v1511
        %v1540 = vmin.f32 %v1536, %v1512
        %v1541 = vmin.f32 %v1537, %v1513
        %v1542 = vmin.f32 %v1538, %v1514
        %v1543 = vmin.f32 %v1539, %v1515
        %v1544 = vmin.f32 %v1540, %v1516
        %v1545 = vmin.f32 %v1541, %v1517
        %v1546 = vmin.f32 %v1542, %v1518
        %v1547 = vmin.f32 %v1543, %v1519
        %v1548 = vmin.f32 %v1544, %v1545
        %v1549 = vmin.f32 %v1546, %v1547
        %v1550 = vmin.f32 %v1548, %v1549
        %v1551 = vrot.slane %v1550, 4
        %v1552 = vmin.f32 %v1550, %v1551
        %v1553 = vrot.slane %v1552, 2
        %v1554 = vmin.f32 %v1552, %v1553
        %v1555 = vrot.slane %v1554, 1
        %v1556 = vmin.f32 %v1554, %v1555
        %vm1557 = vcmp.le.f32.partialorder %v1488, %v1556
        %vm1558 = vcmp.le.f32.partialorder %v1489, %v1556
        %vm1559 = vcmp.le.f32.partialorder %v1490, %v1556
        %vm1560 = vcmp.le.f32.partialorder %v1491, %v1556
        %vm1561 = vcmp.le.f32.partialorder %v1492, %v1556
        %vm1562 = vcmp.le.f32.partialorder %v1493, %v1556
        %vm1563 = vcmp.le.f32.partialorder %v1494, %v1556
        %vm1564 = vcmp.le.f32.partialorder %v1495, %v1556
        %vm1565 = vcmp.le.f32.partialorder %v1496, %v1556
        %vm1566 = vcmp.le.f32.partialorder %v1497, %v1556
        %vm1567 = vcmp.le.f32.partialorder %v1498, %v1556
        %vm1568 = vcmp.le.f32.partialorder %v1499, %v1556
        %vm1569 = vcmp.le.f32.partialorder %v1500, %v1556
        %vm1570 = vcmp.le.f32.partialorder %v1501, %v1556
        %vm1571 = vcmp.le.f32.partialorder %v1502, %v1556
        %vm1572 = vcmp.le.f32.partialorder %v1503, %v1556
        %vm1573 = vcmp.le.f32.partialorder %v1504, %v1556
        %vm1574 = vcmp.le.f32.partialorder %v1505, %v1556
        %vm1575 = vcmp.le.f32.partialorder %v1506, %v1556
        %vm1576 = vcmp.le.f32.partialorder %v1507, %v1556
        %vm1577 = vcmp.le.f32.partialorder %v1508, %v1556
        %vm1578 = vcmp.le.f32.partialorder %v1509, %v1556
        %vm1579 = vcmp.le.f32.partialorder %v1510, %v1556
        %vm1580 = vcmp.le.f32.partialorder %v1511, %v1556
        %vm1581 = vcmp.le.f32.partialorder %v1512, %v1556
        %vm1582 = vcmp.le.f32.partialorder %v1513, %v1556
        %vm1583 = vcmp.le.f32.partialorder %v1514, %v1556
        %vm1584 = vcmp.le.f32.partialorder %v1515, %v1556
        %vm1585 = vcmp.le.f32.partialorder %v1516, %v1556
        %vm1586 = vcmp.le.f32.partialorder %v1517, %v1556
        %vm1587 = vcmp.le.f32.partialorder %v1518, %v1556
        %vm1588 = vcmp.le.f32.partialorder %v1519, %v1556
        %v1589 = vsel %vm1557, %v791, 256.0
        %v1590 = vsel %vm1558, %v792, 256.0
        %v1591 = vsel %vm1559, %v793, 256.0
        %v1592 = vsel %vm1560, %v794, 256.0
        %v1593 = vsel %vm1561, %v795, 256.0
        %v1594 = vsel %vm1562, %v796, 256.0
        %v1595 = vsel %vm1563, %v797, 256.0
        %v1596 = vsel %vm1564, %v798, 256.0
        %v1597 = vsel %vm1565, %v799, 256.0
        %v1598 = vsel %vm1566, %v800, 256.0
        %v1599 = vsel %vm1567, %v801, 256.0
        %v1600 = vsel %vm1568, %v802, 256.0
        %v1601 = vsel %vm1569, %v803, 256.0
        %v1602 = vsel %vm1570, %v804, 256.0
        %v1603 = vsel %vm1571, %v805, 256.0
        %v1604 = vsel %vm1572, %v806, 256.0
        %v1605 = vsel %vm1573, %v807, 256.0
        %v1606 = vsel %vm1574, %v808, 256.0
        %v1607 = vsel %vm1575, %v809, 256.0
        %v1608 = vsel %vm1576, %v810, 256.0
        %v1609 = vsel %vm1577, %v811, 256.0
        %v1610 = vsel %vm1578, %v812, 256.0
        %v1611 = vsel %vm1579, %v813, 256.0
        %v1612 = vsel %vm1580, %v814, 256.0
        %v1613 = vsel %vm1581, %v815, 256.0
        %v1614 = vsel %vm1582, %v816, 256.0
        %v1615 = vsel %vm1583, %v817, 256.0
        %v1616 = vsel %vm1584, %v818, 256.0
        %v1617 = vsel %vm1585, %v819, 256.0
        %v1618 = vsel %vm1586, %v820, 256.0
        %v1619 = vsel %vm1587, %v821, 256.0
        %v1620 = vsel %vm1588, %v822, 256.0
        %v1621 = vmin.f32 %v1589, %v1593
        %v1622 = vmin.f32 %v1590, %v1594
        %v1623 = vmin.f32 %v1591, %v1595
        %v1624 = vmin.f32 %v1592, %v1596
        %v1625 = vmin.f32 %v1621, %v1597
        %v1626 = vmin.f32 %v1622, %v1598
        %v1627 = vmin.f32 %v1623, %v1599
        %v1628 = vmin.f32 %v1624, %v1600
        %v1629 = vmin.f32 %v1625, %v1601
        %v1630 = vmin.f32 %v1626, %v1602
        %v1631 = vmin.f32 %v1627, %v1603
        %v1632 = vmin.f32 %v1628, %v1604
        %v1633 = vmin.f32 %v1629, %v1605
        %v1634 = vmin.f32 %v1630, %v1606
        %v1635 = vmin.f32 %v1631, %v1607
        %v1636 = vmin.f32 %v1632, %v1608
        %v1637 = vmin.f32 %v1633, %v1609
        %v1638 = vmin.f32 %v1634, %v1610
        %v1639 = vmin.f32 %v1635, %v1611
        %v1640 = vmin.f32 %v1636, %v1612
        %v1641 = vmin.f32 %v1637, %v1613
        %v1642 = vmin.f32 %v1638, %v1614
        %v1643 = vmin.f32 %v1639, %v1615
        %v1644 = vmin.f32 %v1640, %v1616
        %v1645 = vmin.f32 %v1641, %v1617
        %v1646 = vmin.f32 %v1642, %v1618
        %v1647 = vmin.f32 %v1643, %v1619
        %v1648 = vmin.f32 %v1644, %v1620
        %v1649 = vmin.f32 %v1645, %v1646
        %v1650 = vmin.f32 %v1647, %v1648
        %v1651 = vmin.f32 %v1649, %v1650
        %v1652 = vrot.slane %v1651, 4
        %v1653 = vmin.f32 %v1651, %v1652
        %v1654 = vrot.slane %v1653, 2
        %v1655 = vmin.f32 %v1653, %v1654
        %v1656 = vrot.slane %v1655, 1
        %v1657 = vmin.f32 %v1655, %v1656
        %vm1658 = vcmp.eq.f32.partialorder %v791, %v1657
        %vm1659 = vcmp.eq.f32.partialorder %v792, %v1657
        %vm1660 = vcmp.eq.f32.partialorder %v793, %v1657
        %vm1661 = vcmp.eq.f32.partialorder %v794, %v1657
        %vm1662 = vcmp.eq.f32.partialorder %v795, %v1657
        %vm1663 = vcmp.eq.f32.partialorder %v796, %v1657
        %vm1664 = vcmp.eq.f32.partialorder %v797, %v1657
        %vm1665 = vcmp.eq.f32.partialorder %v798, %v1657
        %vm1666 = vcmp.eq.f32.partialorder %v799, %v1657
        %vm1667 = vcmp.eq.f32.partialorder %v800, %v1657
        %vm1668 = vcmp.eq.f32.partialorder %v801, %v1657
        %vm1669 = vcmp.eq.f32.partialorder %v802, %v1657
        %vm1670 = vcmp.eq.f32.partialorder %v803, %v1657
        %vm1671 = vcmp.eq.f32.partialorder %v804, %v1657
        %vm1672 = vcmp.eq.f32.partialorder %v805, %v1657
        %vm1673 = vcmp.eq.f32.partialorder %v806, %v1657
        %vm1674 = vcmp.eq.f32.partialorder %v807, %v1657
        %vm1675 = vcmp.eq.f32.partialorder %v808, %v1657
        %vm1676 = vcmp.eq.f32.partialorder %v809, %v1657
        %vm1677 = vcmp.eq.f32.partialorder %v810, %v1657
        %vm1678 = vcmp.eq.f32.partialorder %v811, %v1657
        %vm1679 = vcmp.eq.f32.partialorder %v812, %v1657
        %vm1680 = vcmp.eq.f32.partialorder %v813, %v1657
        %vm1681 = vcmp.eq.f32.partialorder %v814, %v1657
        %vm1682 = vcmp.eq.f32.partialorder %v815, %v1657
        %vm1683 = vcmp.eq.f32.partialorder %v816, %v1657
        %vm1684 = vcmp.eq.f32.partialorder %v817, %v1657
        %vm1685 = vcmp.eq.f32.partialorder %v818, %v1657
        %vm1686 = vcmp.eq.f32.partialorder %v819, %v1657
        %vm1687 = vcmp.eq.f32.partialorder %v820, %v1657
        %vm1688 = vcmp.eq.f32.partialorder %v821, %v1657
        %vm1689 = vcmp.eq.f32.partialorder %v822, %v1657
        %v1690 = vsel %vm1658, 1, 0
        %v1691 = vsel %vm1659, 1, 0
        %v1692 = vsel %vm1660, 1, 0
        %v1693 = vsel %vm1661, 1, 0
        %v1694 = vsel %vm1662, 1, 0
        %v1695 = vsel %vm1663, 1, 0
        %v1696 = vsel %vm1664, 1, 0
        %v1697 = vsel %vm1665, 1, 0
        %v1698 = vsel %vm1666, 1, 0
        %v1699 = vsel %vm1667, 1, 0
        %v1700 = vsel %vm1668, 1, 0
        %v1701 = vsel %vm1669, 1, 0
        %v1702 = vsel %vm1670, 1, 0
        %v1703 = vsel %vm1671, 1, 0
        %v1704 = vsel %vm1672, 1, 0
        %v1705 = vsel %vm1673, 1, 0
        %v1706 = vsel %vm1674, 1, 0
        %v1707 = vsel %vm1675, 1, 0
        %v1708 = vsel %vm1676, 1, 0
        %v1709 = vsel %vm1677, 1, 0
        %v1710 = vsel %vm1678, 1, 0
        %v1711 = vsel %vm1679, 1, 0
        %v1712 = vsel %vm1680, 1, 0
        %v1713 = vsel %vm1681, 1, 0
        %v1714 = vsel %vm1682, 1, 0
        %v1715 = vsel %vm1683, 1, 0
        %v1716 = vsel %vm1684, 1, 0
        %v1717 = vsel %vm1685, 1, 0
        %v1718 = vsel %vm1686, 1, 0
        %v1719 = vsel %vm1687, 1, 0
        %v1720 = vsel %vm1688, 1, 0
        %v1721 = vsel %vm1689, 1, 0
        %v1722 = vcvt.s32.f32 %v1690
        %v1723 = vcvt.s32.f32 %v1691
        %v1724 = vcvt.s32.f32 %v1692
        %v1725 = vcvt.s32.f32 %v1693
        %v1726 = vcvt.s32.f32 %v1694
        %v1727 = vcvt.s32.f32 %v1695
        %v1728 = vcvt.s32.f32 %v1696
        %v1729 = vcvt.s32.f32 %v1697
        %v1730 = vcvt.s32.f32 %v1698
        %v1731 = vcvt.s32.f32 %v1699
        %v1732 = vcvt.s32.f32 %v1700
        %v1733 = vcvt.s32.f32 %v1701
        %v1734 = vcvt.s32.f32 %v1702
        %v1735 = vcvt.s32.f32 %v1703
        %v1736 = vcvt.s32.f32 %v1704
        %v1737 = vcvt.s32.f32 %v1705
        %v1738 = vcvt.s32.f32 %v1706
        %v1739 = vcvt.s32.f32 %v1707
        %v1740 = vcvt.s32.f32 %v1708
        %v1741 = vcvt.s32.f32 %v1709
        %v1742 = vcvt.s32.f32 %v1710
        %v1743 = vcvt.s32.f32 %v1711
        %v1744 = vcvt.s32.f32 %v1712
        %v1745 = vcvt.s32.f32 %v1713
        %v1746 = vcvt.s32.f32 %v1714
        %v1747 = vcvt.s32.f32 %v1715
        %v1748 = vcvt.s32.f32 %v1716
        %v1749 = vcvt.s32.f32 %v1717
        %v1750 = vcvt.s32.f32 %v1718
        %v1751 = vcvt.s32.f32 %v1719
        %v1752 = vcvt.s32.f32 %v1720
        %v1753 = vcvt.s32.f32 %v1721
        %v1754 = vadd.f32 %v1556, %v448
        %v1755 = vmax.f32 %v1754, 1e-20
        %v1756 = vrsqrt.pop %v1755
        %v1757 = vmul.f32 %v1756, %v1755
        %v1758 = vmul.f32 %v1757, %v1756
        %v1759 = vmul.f32 0.5, %v1758
        %v1760 = vsub.f32 1.5, %v1759
        %v1761 = vmul.f32 %v1756, %v1760
        %vm1762 = vweird.f32 %v1755
        %vm1763 = vweird.f32 %v1756
        %vm1764 = vmor %vm1762, %vm1763
        %v1765 = vsel %vm1764, %v1756, %v1761
        %1766 = vmatpush.msra.mxu0 %v1737
        %1767 = vmatpush.msra.mxu0 %v1736
        %1768 = vmatpush.msra.mxu0 %v1735
        %1769 = vmatpush.msra.mxu0 %v1734
        %1770 = vmatpush.msra.mxu0 %v1733
        %1771 = vmatpush.msra.mxu0 %v1732
        %1772 = vmatpush.msra.mxu0 %v1731
        %1773 = vmatpush.msra.mxu0 %v1730
        %1774 = vmatpush.msra.mxu0 %v1729
        %1775 = vmatpush.msra.mxu0 %v1728
        %1776 = vmatpush.msra.mxu0 %v1727
        %1777 = vmatpush.msra.mxu0 %v1726
        %1778 = vmatpush.msra.mxu0 %v1725
        %1779 = vmatpush.msra.mxu0 %v1724
        %1780 = vmatpush.msra.mxu0 %v1723
        %1781 = vmatpush.msra.mxu0 %v1722
        %1782 = vmatmul.f32.gmra.mxu0 %v953
        %v1783 = vpop.f32.mrf.mxu0
        %v1784 = vadd.f32 0.0, %v1783
        %1785 = vmatmul.f32.gmra.mxu0 %v956
        %v1786 = vpop.f32.mrf.mxu0
        %v1787 = vadd.f32 0.0, %v1786
        %1788 = vmatmul.f32.gmra.mxu0 %v959
        %v1789 = vpop.f32.mrf.mxu0
        %v1790 = vadd.f32 0.0, %v1789
        %1791 = vmatmul.f32.gmra.mxu0 %v962
        %v1792 = vpop.f32.mrf.mxu0
        %v1793 = vadd.f32 0.0, %v1792
        %1794 = vdwg.mxu0
        %1795 = vmatpush.msra.mxu0 %v1753
        %1796 = vmatpush.msra.mxu0 %v1752
        %1797 = vmatpush.msra.mxu0 %v1751
        %1798 = vmatpush.msra.mxu0 %v1750
        %1799 = vmatpush.msra.mxu0 %v1749
        %1800 = vmatpush.msra.mxu0 %v1748
        %1801 = vmatpush.msra.mxu0 %v1747
        %1802 = vmatpush.msra.mxu0 %v1746
        %1803 = vmatpush.msra.mxu0 %v1745
        %1804 = vmatpush.msra.mxu0 %v1744
        %1805 = vmatpush.msra.mxu0 %v1743
        %1806 = vmatpush.msra.mxu0 %v1742
        %1807 = vmatpush.msra.mxu0 %v1741
        %1808 = vmatpush.msra.mxu0 %v1740
        %1809 = vmatpush.msra.mxu0 %v1739
        %1810 = vmatpush.msra.mxu0 %v1738
        %1811 = vmatmul.f32.gmra.mxu0 %v982
        %v1812 = vpop.f32.mrf.mxu0
        %v1813 = vadd.f32 %v1784, %v1812
        %1814 = vmatmul.f32.gmra.mxu0 %v985
        %v1815 = vpop.f32.mrf.mxu0
        %v1816 = vadd.f32 %v1787, %v1815
        %1817 = vmatmul.f32.gmra.mxu0 %v988
        %v1818 = vpop.f32.mrf.mxu0
        %v1819 = vadd.f32 %v1790, %v1818
        %1820 = vmatmul.f32.gmra.mxu0 %v991
        %v1821 = vpop.f32.mrf.mxu0
        %v1822 = vadd.f32 %v1793, %v1821
        %1823 = vdwg.mxu0
        %v1824 = vadd.f32 %v1086, %v1813
        %v1825 = vadd.f32 %v1087, %v1816
        %v1826 = vadd.f32 %v1088, %v1819
        %v1827 = vadd.f32 %v1089, %v1822
        %v1828 = vmul.f32 %v1824, 0.1
        %v1829 = vmul.f32 %v1825, 0.1
        %v1830 = vmul.f32 %v1826, 0.1
        %v1831 = vmul.f32 %v1827, 0.1
        %v1832 = vmax.f32 %v1824, %v1828
        %v1833 = vmax.f32 %v1825, %v1829
        %v1834 = vmax.f32 %v1826, %v1830
        %v1835 = vmax.f32 %v1827, %v1831
        %1836 = vmatpush.msra.mxu0 0.0
        %1837 = vmatpush.msra.mxu0 0.0
        %1838 = vmatpush.msra.mxu0 0.0
        %1839 = vmatpush.msra.mxu0 0.0
        %1840 = vmatpush.msra.mxu0 0.0
        %1841 = vmatpush.msra.mxu0 0.0
        %1842 = vmatpush.msra.mxu0 0.0
        %1843 = vmatpush.msra.mxu0 0.0
        %1844 = vmatpush.msra.mxu0 0.0
        %1845 = vmatpush.msra.mxu0 0.0
        %1846 = vmatpush.msra.mxu0 0.0
        %1847 = vmatpush.msra.mxu0 0.0
        %1848 = vmatpush.msra.mxu0 %v1835
        %1849 = vmatpush.msra.mxu0 %v1834
        %1850 = vmatpush.msra.mxu0 %v1833
        %1851 = vmatpush.msra.mxu0 %v1832
        %1852 = vmatmul.f32.gmra.mxu0 %v1436
        %v1853 = vpop.f32.mrf.mxu0
        %v1854 = vadd.f32 %v1417, %v1853
        %1855 = vmatmul.f32.gmra.mxu0 %v1439
        %v1856 = vpop.f32.mrf.mxu0
        %v1857 = vadd.f32 %v1422, %v1856
        %1858 = vmatmul.f32.gmra.mxu0 %v1442
        %v1859 = vpop.f32.mrf.mxu0
        %v1860 = vadd.f32 %v1427, %v1859
        %1861 = vmatmul.f32.gmra.mxu0 %v1445
        %v1862 = vpop.f32.mrf.mxu0
        %v1863 = vadd.f32 %v1432, %v1862
        %1864 = vdwg.mxu0
        %v1865 = vmul.f32 %v1854, 0.1
        %v1866 = vmul.f32 %v1857, 0.1
        %v1867 = vmul.f32 %v1860, 0.1
        %v1868 = vmul.f32 %v1863, 0.1
        %v1869 = vmax.f32 %v1854, %v1865
        %v1870 = vmax.f32 %v1857, %v1866
        %v1871 = vmax.f32 %v1860, %v1867
        %v1872 = vmax.f32 %v1863, %v1868
        %v1873 = vmul.f32 %v1765, %v1869
        %v1874 = vmul.f32 %v1765, %v1870
        %v1875 = vmul.f32 %v1765, %v1871
        %v1876 = vmul.f32 %v1765, %v1872
        %v1877 = vadd.f32 %v1484, %v1873
        %v1878 = vadd.f32 %v1485, %v1874
        %v1879 = vadd.f32 %v1486, %v1875
        %v1880 = vadd.f32 %v1487, %v1876
        %v1881 = vadd.f32 %v1335, %v1765
        %v1882 = vsel %vm1658, 3e+38, %v1488
        %v1883 = vsel %vm1659, 3e+38, %v1489
        %v1884 = vsel %vm1660, 3e+38, %v1490
        %v1885 = vsel %vm1661, 3e+38, %v1491
        %v1886 = vsel %vm1662, 3e+38, %v1492
        %v1887 = vsel %vm1663, 3e+38, %v1493
        %v1888 = vsel %vm1664, 3e+38, %v1494
        %v1889 = vsel %vm1665, 3e+38, %v1495
        %v1890 = vsel %vm1666, 3e+38, %v1496
        %v1891 = vsel %vm1667, 3e+38, %v1497
        %v1892 = vsel %vm1668, 3e+38, %v1498
        %v1893 = vsel %vm1669, 3e+38, %v1499
        %v1894 = vsel %vm1670, 3e+38, %v1500
        %v1895 = vsel %vm1671, 3e+38, %v1501
        %v1896 = vsel %vm1672, 3e+38, %v1502
        %v1897 = vsel %vm1673, 3e+38, %v1503
        %v1898 = vsel %vm1674, 3e+38, %v1504
        %v1899 = vsel %vm1675, 3e+38, %v1505
        %v1900 = vsel %vm1676, 3e+38, %v1506
        %v1901 = vsel %vm1677, 3e+38, %v1507
        %v1902 = vsel %vm1678, 3e+38, %v1508
        %v1903 = vsel %vm1679, 3e+38, %v1509
        %v1904 = vsel %vm1680, 3e+38, %v1510
        %v1905 = vsel %vm1681, 3e+38, %v1511
        %v1906 = vsel %vm1682, 3e+38, %v1512
        %v1907 = vsel %vm1683, 3e+38, %v1513
        %v1908 = vsel %vm1684, 3e+38, %v1514
        %v1909 = vsel %vm1685, 3e+38, %v1515
        %v1910 = vsel %vm1686, 3e+38, %v1516
        %v1911 = vsel %vm1687, 3e+38, %v1517
        %v1912 = vsel %vm1688, 3e+38, %v1518
        %v1913 = vsel %vm1689, 3e+38, %v1519
        %v1914 = vmin.f32 %v1882, %v1886
        %v1915 = vmin.f32 %v1883, %v1887
        %v1916 = vmin.f32 %v1884, %v1888
        %v1917 = vmin.f32 %v1885, %v1889
        %v1918 = vmin.f32 %v1914, %v1890
        %v1919 = vmin.f32 %v1915, %v1891
        %v1920 = vmin.f32 %v1916, %v1892
        %v1921 = vmin.f32 %v1917, %v1893
        %v1922 = vmin.f32 %v1918, %v1894
        %v1923 = vmin.f32 %v1919, %v1895
        %v1924 = vmin.f32 %v1920, %v1896
        %v1925 = vmin.f32 %v1921, %v1897
        %v1926 = vmin.f32 %v1922, %v1898
        %v1927 = vmin.f32 %v1923, %v1899
        %v1928 = vmin.f32 %v1924, %v1900
        %v1929 = vmin.f32 %v1925, %v1901
        %v1930 = vmin.f32 %v1926, %v1902
        %v1931 = vmin.f32 %v1927, %v1903
        %v1932 = vmin.f32 %v1928, %v1904
        %v1933 = vmin.f32 %v1929, %v1905
        %v1934 = vmin.f32 %v1930, %v1906
        %v1935 = vmin.f32 %v1931, %v1907
        %v1936 = vmin.f32 %v1932, %v1908
        %v1937 = vmin.f32 %v1933, %v1909
        %v1938 = vmin.f32 %v1934, %v1910
        %v1939 = vmin.f32 %v1935, %v1911
        %v1940 = vmin.f32 %v1936, %v1912
        %v1941 = vmin.f32 %v1937, %v1913
        %v1942 = vmin.f32 %v1938, %v1939
        %v1943 = vmin.f32 %v1940, %v1941
        %v1944 = vmin.f32 %v1942, %v1943
        %v1945 = vrot.slane %v1944, 4
        %v1946 = vmin.f32 %v1944, %v1945
        %v1947 = vrot.slane %v1946, 2
        %v1948 = vmin.f32 %v1946, %v1947
        %v1949 = vrot.slane %v1948, 1
        %v1950 = vmin.f32 %v1948, %v1949
        %vm1951 = vcmp.le.f32.partialorder %v1882, %v1950
        %vm1952 = vcmp.le.f32.partialorder %v1883, %v1950
        %vm1953 = vcmp.le.f32.partialorder %v1884, %v1950
        %vm1954 = vcmp.le.f32.partialorder %v1885, %v1950
        %vm1955 = vcmp.le.f32.partialorder %v1886, %v1950
        %vm1956 = vcmp.le.f32.partialorder %v1887, %v1950
        %vm1957 = vcmp.le.f32.partialorder %v1888, %v1950
        %vm1958 = vcmp.le.f32.partialorder %v1889, %v1950
        %vm1959 = vcmp.le.f32.partialorder %v1890, %v1950
        %vm1960 = vcmp.le.f32.partialorder %v1891, %v1950
        %vm1961 = vcmp.le.f32.partialorder %v1892, %v1950
        %vm1962 = vcmp.le.f32.partialorder %v1893, %v1950
        %vm1963 = vcmp.le.f32.partialorder %v1894, %v1950
        %vm1964 = vcmp.le.f32.partialorder %v1895, %v1950
        %vm1965 = vcmp.le.f32.partialorder %v1896, %v1950
        %vm1966 = vcmp.le.f32.partialorder %v1897, %v1950
        %vm1967 = vcmp.le.f32.partialorder %v1898, %v1950
        %vm1968 = vcmp.le.f32.partialorder %v1899, %v1950
        %vm1969 = vcmp.le.f32.partialorder %v1900, %v1950
        %vm1970 = vcmp.le.f32.partialorder %v1901, %v1950
        %vm1971 = vcmp.le.f32.partialorder %v1902, %v1950
        %vm1972 = vcmp.le.f32.partialorder %v1903, %v1950
        %vm1973 = vcmp.le.f32.partialorder %v1904, %v1950
        %vm1974 = vcmp.le.f32.partialorder %v1905, %v1950
        %vm1975 = vcmp.le.f32.partialorder %v1906, %v1950
        %vm1976 = vcmp.le.f32.partialorder %v1907, %v1950
        %vm1977 = vcmp.le.f32.partialorder %v1908, %v1950
        %vm1978 = vcmp.le.f32.partialorder %v1909, %v1950
        %vm1979 = vcmp.le.f32.partialorder %v1910, %v1950
        %vm1980 = vcmp.le.f32.partialorder %v1911, %v1950
        %vm1981 = vcmp.le.f32.partialorder %v1912, %v1950
        %vm1982 = vcmp.le.f32.partialorder %v1913, %v1950
        %v1983 = vsel %vm1951, %v791, 256.0
        %v1984 = vsel %vm1952, %v792, 256.0
        %v1985 = vsel %vm1953, %v793, 256.0
        %v1986 = vsel %vm1954, %v794, 256.0
        %v1987 = vsel %vm1955, %v795, 256.0
        %v1988 = vsel %vm1956, %v796, 256.0
        %v1989 = vsel %vm1957, %v797, 256.0
        %v1990 = vsel %vm1958, %v798, 256.0
        %v1991 = vsel %vm1959, %v799, 256.0
        %v1992 = vsel %vm1960, %v800, 256.0
        %v1993 = vsel %vm1961, %v801, 256.0
        %v1994 = vsel %vm1962, %v802, 256.0
        %v1995 = vsel %vm1963, %v803, 256.0
        %v1996 = vsel %vm1964, %v804, 256.0
        %v1997 = vsel %vm1965, %v805, 256.0
        %v1998 = vsel %vm1966, %v806, 256.0
        %v1999 = vsel %vm1967, %v807, 256.0
        %v2000 = vsel %vm1968, %v808, 256.0
        %v2001 = vsel %vm1969, %v809, 256.0
        %v2002 = vsel %vm1970, %v810, 256.0
        %v2003 = vsel %vm1971, %v811, 256.0
        %v2004 = vsel %vm1972, %v812, 256.0
        %v2005 = vsel %vm1973, %v813, 256.0
        %v2006 = vsel %vm1974, %v814, 256.0
        %v2007 = vsel %vm1975, %v815, 256.0
        %v2008 = vsel %vm1976, %v816, 256.0
        %v2009 = vsel %vm1977, %v817, 256.0
        %v2010 = vsel %vm1978, %v818, 256.0
        %v2011 = vsel %vm1979, %v819, 256.0
        %v2012 = vsel %vm1980, %v820, 256.0
        %v2013 = vsel %vm1981, %v821, 256.0
        %v2014 = vsel %vm1982, %v822, 256.0
        %v2015 = vmin.f32 %v1983, %v1987
        %v2016 = vmin.f32 %v1984, %v1988
        %v2017 = vmin.f32 %v1985, %v1989
        %v2018 = vmin.f32 %v1986, %v1990
        %v2019 = vmin.f32 %v2015, %v1991
        %v2020 = vmin.f32 %v2016, %v1992
        %v2021 = vmin.f32 %v2017, %v1993
        %v2022 = vmin.f32 %v2018, %v1994
        %v2023 = vmin.f32 %v2019, %v1995
        %v2024 = vmin.f32 %v2020, %v1996
        %v2025 = vmin.f32 %v2021, %v1997
        %v2026 = vmin.f32 %v2022, %v1998
        %v2027 = vmin.f32 %v2023, %v1999
        %v2028 = vmin.f32 %v2024, %v2000
        %v2029 = vmin.f32 %v2025, %v2001
        %v2030 = vmin.f32 %v2026, %v2002
        %v2031 = vmin.f32 %v2027, %v2003
        %v2032 = vmin.f32 %v2028, %v2004
        %v2033 = vmin.f32 %v2029, %v2005
        %v2034 = vmin.f32 %v2030, %v2006
        %v2035 = vmin.f32 %v2031, %v2007
        %v2036 = vmin.f32 %v2032, %v2008
        %v2037 = vmin.f32 %v2033, %v2009
        %v2038 = vmin.f32 %v2034, %v2010
        %v2039 = vmin.f32 %v2035, %v2011
        %v2040 = vmin.f32 %v2036, %v2012
        %v2041 = vmin.f32 %v2037, %v2013
        %v2042 = vmin.f32 %v2038, %v2014
        %v2043 = vmin.f32 %v2039, %v2040
        %v2044 = vmin.f32 %v2041, %v2042
        %v2045 = vmin.f32 %v2043, %v2044
        %v2046 = vrot.slane %v2045, 4
        %v2047 = vmin.f32 %v2045, %v2046
        %v2048 = vrot.slane %v2047, 2
        %v2049 = vmin.f32 %v2047, %v2048
        %v2050 = vrot.slane %v2049, 1
        %v2051 = vmin.f32 %v2049, %v2050
        %vm2052 = vcmp.eq.f32.partialorder %v791, %v2051
        %vm2053 = vcmp.eq.f32.partialorder %v792, %v2051
        %vm2054 = vcmp.eq.f32.partialorder %v793, %v2051
        %vm2055 = vcmp.eq.f32.partialorder %v794, %v2051
        %vm2056 = vcmp.eq.f32.partialorder %v795, %v2051
        %vm2057 = vcmp.eq.f32.partialorder %v796, %v2051
        %vm2058 = vcmp.eq.f32.partialorder %v797, %v2051
        %vm2059 = vcmp.eq.f32.partialorder %v798, %v2051
        %vm2060 = vcmp.eq.f32.partialorder %v799, %v2051
        %vm2061 = vcmp.eq.f32.partialorder %v800, %v2051
        %vm2062 = vcmp.eq.f32.partialorder %v801, %v2051
        %vm2063 = vcmp.eq.f32.partialorder %v802, %v2051
        %vm2064 = vcmp.eq.f32.partialorder %v803, %v2051
        %vm2065 = vcmp.eq.f32.partialorder %v804, %v2051
        %vm2066 = vcmp.eq.f32.partialorder %v805, %v2051
        %vm2067 = vcmp.eq.f32.partialorder %v806, %v2051
        %vm2068 = vcmp.eq.f32.partialorder %v807, %v2051
        %vm2069 = vcmp.eq.f32.partialorder %v808, %v2051
        %vm2070 = vcmp.eq.f32.partialorder %v809, %v2051
        %vm2071 = vcmp.eq.f32.partialorder %v810, %v2051
        %vm2072 = vcmp.eq.f32.partialorder %v811, %v2051
        %vm2073 = vcmp.eq.f32.partialorder %v812, %v2051
        %vm2074 = vcmp.eq.f32.partialorder %v813, %v2051
        %vm2075 = vcmp.eq.f32.partialorder %v814, %v2051
        %vm2076 = vcmp.eq.f32.partialorder %v815, %v2051
        %vm2077 = vcmp.eq.f32.partialorder %v816, %v2051
        %vm2078 = vcmp.eq.f32.partialorder %v817, %v2051
        %vm2079 = vcmp.eq.f32.partialorder %v818, %v2051
        %vm2080 = vcmp.eq.f32.partialorder %v819, %v2051
        %vm2081 = vcmp.eq.f32.partialorder %v820, %v2051
        %vm2082 = vcmp.eq.f32.partialorder %v821, %v2051
        %vm2083 = vcmp.eq.f32.partialorder %v822, %v2051
        %v2084 = vsel %vm2052, 1, 0
        %v2085 = vsel %vm2053, 1, 0
        %v2086 = vsel %vm2054, 1, 0
        %v2087 = vsel %vm2055, 1, 0
        %v2088 = vsel %vm2056, 1, 0
        %v2089 = vsel %vm2057, 1, 0
        %v2090 = vsel %vm2058, 1, 0
        %v2091 = vsel %vm2059, 1, 0
        %v2092 = vsel %vm2060, 1, 0
        %v2093 = vsel %vm2061, 1, 0
        %v2094 = vsel %vm2062, 1, 0
        %v2095 = vsel %vm2063, 1, 0
        %v2096 = vsel %vm2064, 1, 0
        %v2097 = vsel %vm2065, 1, 0
        %v2098 = vsel %vm2066, 1, 0
        %v2099 = vsel %vm2067, 1, 0
        %v2100 = vsel %vm2068, 1, 0
        %v2101 = vsel %vm2069, 1, 0
        %v2102 = vsel %vm2070, 1, 0
        %v2103 = vsel %vm2071, 1, 0
        %v2104 = vsel %vm2072, 1, 0
        %v2105 = vsel %vm2073, 1, 0
        %v2106 = vsel %vm2074, 1, 0
        %v2107 = vsel %vm2075, 1, 0
        %v2108 = vsel %vm2076, 1, 0
        %v2109 = vsel %vm2077, 1, 0
        %v2110 = vsel %vm2078, 1, 0
        %v2111 = vsel %vm2079, 1, 0
        %v2112 = vsel %vm2080, 1, 0
        %v2113 = vsel %vm2081, 1, 0
        %v2114 = vsel %vm2082, 1, 0
        %v2115 = vsel %vm2083, 1, 0
        %v2116 = vcvt.s32.f32 %v2084
        %v2117 = vcvt.s32.f32 %v2085
        %v2118 = vcvt.s32.f32 %v2086
        %v2119 = vcvt.s32.f32 %v2087
        %v2120 = vcvt.s32.f32 %v2088
        %v2121 = vcvt.s32.f32 %v2089
        %v2122 = vcvt.s32.f32 %v2090
        %v2123 = vcvt.s32.f32 %v2091
        %v2124 = vcvt.s32.f32 %v2092
        %v2125 = vcvt.s32.f32 %v2093
        %v2126 = vcvt.s32.f32 %v2094
        %v2127 = vcvt.s32.f32 %v2095
        %v2128 = vcvt.s32.f32 %v2096
        %v2129 = vcvt.s32.f32 %v2097
        %v2130 = vcvt.s32.f32 %v2098
        %v2131 = vcvt.s32.f32 %v2099
        %v2132 = vcvt.s32.f32 %v2100
        %v2133 = vcvt.s32.f32 %v2101
        %v2134 = vcvt.s32.f32 %v2102
        %v2135 = vcvt.s32.f32 %v2103
        %v2136 = vcvt.s32.f32 %v2104
        %v2137 = vcvt.s32.f32 %v2105
        %v2138 = vcvt.s32.f32 %v2106
        %v2139 = vcvt.s32.f32 %v2107
        %v2140 = vcvt.s32.f32 %v2108
        %v2141 = vcvt.s32.f32 %v2109
        %v2142 = vcvt.s32.f32 %v2110
        %v2143 = vcvt.s32.f32 %v2111
        %v2144 = vcvt.s32.f32 %v2112
        %v2145 = vcvt.s32.f32 %v2113
        %v2146 = vcvt.s32.f32 %v2114
        %v2147 = vcvt.s32.f32 %v2115
        %v2148 = vadd.f32 %v1950, %v448
        %v2149 = vmax.f32 %v2148, 1e-20
        %v2150 = vrsqrt.pop %v2149
        %v2151 = vmul.f32 %v2150, %v2149
        %v2152 = vmul.f32 %v2151, %v2150
        %v2153 = vmul.f32 0.5, %v2152
        %v2154 = vsub.f32 1.5, %v2153
        %v2155 = vmul.f32 %v2150, %v2154
        %vm2156 = vweird.f32 %v2149
        %vm2157 = vweird.f32 %v2150
        %vm2158 = vmor %vm2156, %vm2157
        %v2159 = vsel %vm2158, %v2150, %v2155
        %2160 = vmatpush.msra.mxu0 %v2131
        %2161 = vmatpush.msra.mxu0 %v2130
        %2162 = vmatpush.msra.mxu0 %v2129
        %2163 = vmatpush.msra.mxu0 %v2128
        %2164 = vmatpush.msra.mxu0 %v2127
        %2165 = vmatpush.msra.mxu0 %v2126
        %2166 = vmatpush.msra.mxu0 %v2125
        %2167 = vmatpush.msra.mxu0 %v2124
        %2168 = vmatpush.msra.mxu0 %v2123
        %2169 = vmatpush.msra.mxu0 %v2122
        %2170 = vmatpush.msra.mxu0 %v2121
        %2171 = vmatpush.msra.mxu0 %v2120
        %2172 = vmatpush.msra.mxu0 %v2119
        %2173 = vmatpush.msra.mxu0 %v2118
        %2174 = vmatpush.msra.mxu0 %v2117
        %2175 = vmatpush.msra.mxu0 %v2116
        %2176 = vmatmul.f32.gmra.mxu0 %v953
        %v2177 = vpop.f32.mrf.mxu0
        %v2178 = vadd.f32 0.0, %v2177
        %2179 = vmatmul.f32.gmra.mxu0 %v956
        %v2180 = vpop.f32.mrf.mxu0
        %v2181 = vadd.f32 0.0, %v2180
        %2182 = vmatmul.f32.gmra.mxu0 %v959
        %v2183 = vpop.f32.mrf.mxu0
        %v2184 = vadd.f32 0.0, %v2183
        %2185 = vmatmul.f32.gmra.mxu0 %v962
        %v2186 = vpop.f32.mrf.mxu0
        %v2187 = vadd.f32 0.0, %v2186
        %2188 = vdwg.mxu0
        %2189 = vmatpush.msra.mxu0 %v2147
        %2190 = vmatpush.msra.mxu0 %v2146
        %2191 = vmatpush.msra.mxu0 %v2145
        %2192 = vmatpush.msra.mxu0 %v2144
        %2193 = vmatpush.msra.mxu0 %v2143
        %2194 = vmatpush.msra.mxu0 %v2142
        %2195 = vmatpush.msra.mxu0 %v2141
        %2196 = vmatpush.msra.mxu0 %v2140
        %2197 = vmatpush.msra.mxu0 %v2139
        %2198 = vmatpush.msra.mxu0 %v2138
        %2199 = vmatpush.msra.mxu0 %v2137
        %2200 = vmatpush.msra.mxu0 %v2136
        %2201 = vmatpush.msra.mxu0 %v2135
        %2202 = vmatpush.msra.mxu0 %v2134
        %2203 = vmatpush.msra.mxu0 %v2133
        %2204 = vmatpush.msra.mxu0 %v2132
        %2205 = vmatmul.f32.gmra.mxu0 %v982
        %v2206 = vpop.f32.mrf.mxu0
        %v2207 = vadd.f32 %v2178, %v2206
        %2208 = vmatmul.f32.gmra.mxu0 %v985
        %v2209 = vpop.f32.mrf.mxu0
        %v2210 = vadd.f32 %v2181, %v2209
        %2211 = vmatmul.f32.gmra.mxu0 %v988
        %v2212 = vpop.f32.mrf.mxu0
        %v2213 = vadd.f32 %v2184, %v2212
        %2214 = vmatmul.f32.gmra.mxu0 %v991
        %v2215 = vpop.f32.mrf.mxu0
        %v2216 = vadd.f32 %v2187, %v2215
        %2217 = vdwg.mxu0
        %v2218 = vadd.f32 %v1086, %v2207
        %v2219 = vadd.f32 %v1087, %v2210
        %v2220 = vadd.f32 %v1088, %v2213
        %v2221 = vadd.f32 %v1089, %v2216
        %v2222 = vmul.f32 %v2218, 0.1
        %v2223 = vmul.f32 %v2219, 0.1
        %v2224 = vmul.f32 %v2220, 0.1
        %v2225 = vmul.f32 %v2221, 0.1
        %v2226 = vmax.f32 %v2218, %v2222
        %v2227 = vmax.f32 %v2219, %v2223
        %v2228 = vmax.f32 %v2220, %v2224
        %v2229 = vmax.f32 %v2221, %v2225
        %2230 = vmatpush.msra.mxu0 0.0
        %2231 = vmatpush.msra.mxu0 0.0
        %2232 = vmatpush.msra.mxu0 0.0
        %2233 = vmatpush.msra.mxu0 0.0
        %2234 = vmatpush.msra.mxu0 0.0
        %2235 = vmatpush.msra.mxu0 0.0
        %2236 = vmatpush.msra.mxu0 0.0
        %2237 = vmatpush.msra.mxu0 0.0
        %2238 = vmatpush.msra.mxu0 0.0
        %2239 = vmatpush.msra.mxu0 0.0
        %2240 = vmatpush.msra.mxu0 0.0
        %2241 = vmatpush.msra.mxu0 0.0
        %2242 = vmatpush.msra.mxu0 %v2229
        %2243 = vmatpush.msra.mxu0 %v2228
        %2244 = vmatpush.msra.mxu0 %v2227
        %2245 = vmatpush.msra.mxu0 %v2226
        %2246 = vmatmul.f32.gmra.mxu0 %v1436
        %v2247 = vpop.f32.mrf.mxu0
        %v2248 = vadd.f32 %v1417, %v2247
        %2249 = vmatmul.f32.gmra.mxu0 %v1439
        %v2250 = vpop.f32.mrf.mxu0
        %v2251 = vadd.f32 %v1422, %v2250
        %2252 = vmatmul.f32.gmra.mxu0 %v1442
        %v2253 = vpop.f32.mrf.mxu0
        %v2254 = vadd.f32 %v1427, %v2253
        %2255 = vmatmul.f32.gmra.mxu0 %v1445
        %v2256 = vpop.f32.mrf.mxu0
        %v2257 = vadd.f32 %v1432, %v2256
        %2258 = vdwg.mxu0
        %v2259 = vmul.f32 %v2248, 0.1
        %v2260 = vmul.f32 %v2251, 0.1
        %v2261 = vmul.f32 %v2254, 0.1
        %v2262 = vmul.f32 %v2257, 0.1
        %v2263 = vmax.f32 %v2248, %v2259
        %v2264 = vmax.f32 %v2251, %v2260
        %v2265 = vmax.f32 %v2254, %v2261
        %v2266 = vmax.f32 %v2257, %v2262
        %v2267 = vmul.f32 %v2159, %v2263
        %v2268 = vmul.f32 %v2159, %v2264
        %v2269 = vmul.f32 %v2159, %v2265
        %v2270 = vmul.f32 %v2159, %v2266
        %v2271 = vadd.f32 %v1877, %v2267
        %v2272 = vadd.f32 %v1878, %v2268
        %v2273 = vadd.f32 %v1879, %v2269
        %v2274 = vadd.f32 %v1880, %v2270
        %v2275 = vadd.f32 %v1881, %v2159
        %v2276 = vsel %vm2052, 3e+38, %v1882
        %v2277 = vsel %vm2053, 3e+38, %v1883
        %v2278 = vsel %vm2054, 3e+38, %v1884
        %v2279 = vsel %vm2055, 3e+38, %v1885
        %v2280 = vsel %vm2056, 3e+38, %v1886
        %v2281 = vsel %vm2057, 3e+38, %v1887
        %v2282 = vsel %vm2058, 3e+38, %v1888
        %v2283 = vsel %vm2059, 3e+38, %v1889
        %v2284 = vsel %vm2060, 3e+38, %v1890
        %v2285 = vsel %vm2061, 3e+38, %v1891
        %v2286 = vsel %vm2062, 3e+38, %v1892
        %v2287 = vsel %vm2063, 3e+38, %v1893
        %v2288 = vsel %vm2064, 3e+38, %v1894
        %v2289 = vsel %vm2065, 3e+38, %v1895
        %v2290 = vsel %vm2066, 3e+38, %v1896
        %v2291 = vsel %vm2067, 3e+38, %v1897
        %v2292 = vsel %vm2068, 3e+38, %v1898
        %v2293 = vsel %vm2069, 3e+38, %v1899
        %v2294 = vsel %vm2070, 3e+38, %v1900
        %v2295 = vsel %vm2071, 3e+38, %v1901
        %v2296 = vsel %vm2072, 3e+38, %v1902
        %v2297 = vsel %vm2073, 3e+38, %v1903
        %v2298 = vsel %vm2074, 3e+38, %v1904
        %v2299 = vsel %vm2075, 3e+38, %v1905
        %v2300 = vsel %vm2076, 3e+38, %v1906
        %v2301 = vsel %vm2077, 3e+38, %v1907
        %v2302 = vsel %vm2078, 3e+38, %v1908
        %v2303 = vsel %vm2079, 3e+38, %v1909
        %v2304 = vsel %vm2080, 3e+38, %v1910
        %v2305 = vsel %vm2081, 3e+38, %v1911
        %v2306 = vsel %vm2082, 3e+38, %v1912
        %v2307 = vsel %vm2083, 3e+38, %v1913
        %v2308 = vmin.f32 %v2276, %v2280
        %v2309 = vmin.f32 %v2277, %v2281
        %v2310 = vmin.f32 %v2278, %v2282
        %v2311 = vmin.f32 %v2279, %v2283
        %v2312 = vmin.f32 %v2308, %v2284
        %v2313 = vmin.f32 %v2309, %v2285
        %v2314 = vmin.f32 %v2310, %v2286
        %v2315 = vmin.f32 %v2311, %v2287
        %v2316 = vmin.f32 %v2312, %v2288
        %v2317 = vmin.f32 %v2313, %v2289
        %v2318 = vmin.f32 %v2314, %v2290
        %v2319 = vmin.f32 %v2315, %v2291
        %v2320 = vmin.f32 %v2316, %v2292
        %v2321 = vmin.f32 %v2317, %v2293
        %v2322 = vmin.f32 %v2318, %v2294
        %v2323 = vmin.f32 %v2319, %v2295
        %v2324 = vmin.f32 %v2320, %v2296
        %v2325 = vmin.f32 %v2321, %v2297
        %v2326 = vmin.f32 %v2322, %v2298
        %v2327 = vmin.f32 %v2323, %v2299
        %v2328 = vmin.f32 %v2324, %v2300
        %v2329 = vmin.f32 %v2325, %v2301
        %v2330 = vmin.f32 %v2326, %v2302
        %v2331 = vmin.f32 %v2327, %v2303
        %v2332 = vmin.f32 %v2328, %v2304
        %v2333 = vmin.f32 %v2329, %v2305
        %v2334 = vmin.f32 %v2330, %v2306
        %v2335 = vmin.f32 %v2331, %v2307
        %v2336 = vmin.f32 %v2332, %v2333
        %v2337 = vmin.f32 %v2334, %v2335
        %v2338 = vmin.f32 %v2336, %v2337
        %v2339 = vrot.slane %v2338, 4
        %v2340 = vmin.f32 %v2338, %v2339
        %v2341 = vrot.slane %v2340, 2
        %v2342 = vmin.f32 %v2340, %v2341
        %v2343 = vrot.slane %v2342, 1
        %v2344 = vmin.f32 %v2342, %v2343
        %vm2345 = vcmp.le.f32.partialorder %v2276, %v2344
        %vm2346 = vcmp.le.f32.partialorder %v2277, %v2344
        %vm2347 = vcmp.le.f32.partialorder %v2278, %v2344
        %vm2348 = vcmp.le.f32.partialorder %v2279, %v2344
        %vm2349 = vcmp.le.f32.partialorder %v2280, %v2344
        %vm2350 = vcmp.le.f32.partialorder %v2281, %v2344
        %vm2351 = vcmp.le.f32.partialorder %v2282, %v2344
        %vm2352 = vcmp.le.f32.partialorder %v2283, %v2344
        %vm2353 = vcmp.le.f32.partialorder %v2284, %v2344
        %vm2354 = vcmp.le.f32.partialorder %v2285, %v2344
        %vm2355 = vcmp.le.f32.partialorder %v2286, %v2344
        %vm2356 = vcmp.le.f32.partialorder %v2287, %v2344
        %vm2357 = vcmp.le.f32.partialorder %v2288, %v2344
        %vm2358 = vcmp.le.f32.partialorder %v2289, %v2344
        %vm2359 = vcmp.le.f32.partialorder %v2290, %v2344
        %vm2360 = vcmp.le.f32.partialorder %v2291, %v2344
        %vm2361 = vcmp.le.f32.partialorder %v2292, %v2344
        %vm2362 = vcmp.le.f32.partialorder %v2293, %v2344
        %vm2363 = vcmp.le.f32.partialorder %v2294, %v2344
        %vm2364 = vcmp.le.f32.partialorder %v2295, %v2344
        %vm2365 = vcmp.le.f32.partialorder %v2296, %v2344
        %vm2366 = vcmp.le.f32.partialorder %v2297, %v2344
        %vm2367 = vcmp.le.f32.partialorder %v2298, %v2344
        %vm2368 = vcmp.le.f32.partialorder %v2299, %v2344
        %vm2369 = vcmp.le.f32.partialorder %v2300, %v2344
        %vm2370 = vcmp.le.f32.partialorder %v2301, %v2344
        %vm2371 = vcmp.le.f32.partialorder %v2302, %v2344
        %vm2372 = vcmp.le.f32.partialorder %v2303, %v2344
        %vm2373 = vcmp.le.f32.partialorder %v2304, %v2344
        %vm2374 = vcmp.le.f32.partialorder %v2305, %v2344
        %vm2375 = vcmp.le.f32.partialorder %v2306, %v2344
        %vm2376 = vcmp.le.f32.partialorder %v2307, %v2344
        %v2377 = vsel %vm2345, %v791, 256.0
        %v2378 = vsel %vm2346, %v792, 256.0
        %v2379 = vsel %vm2347, %v793, 256.0
        %v2380 = vsel %vm2348, %v794, 256.0
        %v2381 = vsel %vm2349, %v795, 256.0
        %v2382 = vsel %vm2350, %v796, 256.0
        %v2383 = vsel %vm2351, %v797, 256.0
        %v2384 = vsel %vm2352, %v798, 256.0
        %v2385 = vsel %vm2353, %v799, 256.0
        %v2386 = vsel %vm2354, %v800, 256.0
        %v2387 = vsel %vm2355, %v801, 256.0
        %v2388 = vsel %vm2356, %v802, 256.0
        %v2389 = vsel %vm2357, %v803, 256.0
        %v2390 = vsel %vm2358, %v804, 256.0
        %v2391 = vsel %vm2359, %v805, 256.0
        %v2392 = vsel %vm2360, %v806, 256.0
        %v2393 = vsel %vm2361, %v807, 256.0
        %v2394 = vsel %vm2362, %v808, 256.0
        %v2395 = vsel %vm2363, %v809, 256.0
        %v2396 = vsel %vm2364, %v810, 256.0
        %v2397 = vsel %vm2365, %v811, 256.0
        %v2398 = vsel %vm2366, %v812, 256.0
        %v2399 = vsel %vm2367, %v813, 256.0
        %v2400 = vsel %vm2368, %v814, 256.0
        %v2401 = vsel %vm2369, %v815, 256.0
        %v2402 = vsel %vm2370, %v816, 256.0
        %v2403 = vsel %vm2371, %v817, 256.0
        %v2404 = vsel %vm2372, %v818, 256.0
        %v2405 = vsel %vm2373, %v819, 256.0
        %v2406 = vsel %vm2374, %v820, 256.0
        %v2407 = vsel %vm2375, %v821, 256.0
        %v2408 = vsel %vm2376, %v822, 256.0
        %v2409 = vmin.f32 %v2377, %v2381
        %v2410 = vmin.f32 %v2378, %v2382
        %v2411 = vmin.f32 %v2379, %v2383
        %v2412 = vmin.f32 %v2380, %v2384
        %v2413 = vmin.f32 %v2409, %v2385
        %v2414 = vmin.f32 %v2410, %v2386
        %v2415 = vmin.f32 %v2411, %v2387
        %v2416 = vmin.f32 %v2412, %v2388
        %v2417 = vmin.f32 %v2413, %v2389
        %v2418 = vmin.f32 %v2414, %v2390
        %v2419 = vmin.f32 %v2415, %v2391
        %v2420 = vmin.f32 %v2416, %v2392
        %v2421 = vmin.f32 %v2417, %v2393
        %v2422 = vmin.f32 %v2418, %v2394
        %v2423 = vmin.f32 %v2419, %v2395
        %v2424 = vmin.f32 %v2420, %v2396
        %v2425 = vmin.f32 %v2421, %v2397
        %v2426 = vmin.f32 %v2422, %v2398
        %v2427 = vmin.f32 %v2423, %v2399
        %v2428 = vmin.f32 %v2424, %v2400
        %v2429 = vmin.f32 %v2425, %v2401
        %v2430 = vmin.f32 %v2426, %v2402
        %v2431 = vmin.f32 %v2427, %v2403
        %v2432 = vmin.f32 %v2428, %v2404
        %v2433 = vmin.f32 %v2429, %v2405
        %v2434 = vmin.f32 %v2430, %v2406
        %v2435 = vmin.f32 %v2431, %v2407
        %v2436 = vmin.f32 %v2432, %v2408
        %v2437 = vmin.f32 %v2433, %v2434
        %v2438 = vmin.f32 %v2435, %v2436
        %v2439 = vmin.f32 %v2437, %v2438
        %v2440 = vrot.slane %v2439, 4
        %v2441 = vmin.f32 %v2439, %v2440
        %v2442 = vrot.slane %v2441, 2
        %v2443 = vmin.f32 %v2441, %v2442
        %v2444 = vrot.slane %v2443, 1
        %v2445 = vmin.f32 %v2443, %v2444
        %vm2446 = vcmp.eq.f32.partialorder %v791, %v2445
        %vm2447 = vcmp.eq.f32.partialorder %v792, %v2445
        %vm2448 = vcmp.eq.f32.partialorder %v793, %v2445
        %vm2449 = vcmp.eq.f32.partialorder %v794, %v2445
        %vm2450 = vcmp.eq.f32.partialorder %v795, %v2445
        %vm2451 = vcmp.eq.f32.partialorder %v796, %v2445
        %vm2452 = vcmp.eq.f32.partialorder %v797, %v2445
        %vm2453 = vcmp.eq.f32.partialorder %v798, %v2445
        %vm2454 = vcmp.eq.f32.partialorder %v799, %v2445
        %vm2455 = vcmp.eq.f32.partialorder %v800, %v2445
        %vm2456 = vcmp.eq.f32.partialorder %v801, %v2445
        %vm2457 = vcmp.eq.f32.partialorder %v802, %v2445
        %vm2458 = vcmp.eq.f32.partialorder %v803, %v2445
        %vm2459 = vcmp.eq.f32.partialorder %v804, %v2445
        %vm2460 = vcmp.eq.f32.partialorder %v805, %v2445
        %vm2461 = vcmp.eq.f32.partialorder %v806, %v2445
        %vm2462 = vcmp.eq.f32.partialorder %v807, %v2445
        %vm2463 = vcmp.eq.f32.partialorder %v808, %v2445
        %vm2464 = vcmp.eq.f32.partialorder %v809, %v2445
        %vm2465 = vcmp.eq.f32.partialorder %v810, %v2445
        %vm2466 = vcmp.eq.f32.partialorder %v811, %v2445
        %vm2467 = vcmp.eq.f32.partialorder %v812, %v2445
        %vm2468 = vcmp.eq.f32.partialorder %v813, %v2445
        %vm2469 = vcmp.eq.f32.partialorder %v814, %v2445
        %vm2470 = vcmp.eq.f32.partialorder %v815, %v2445
        %vm2471 = vcmp.eq.f32.partialorder %v816, %v2445
        %vm2472 = vcmp.eq.f32.partialorder %v817, %v2445
        %vm2473 = vcmp.eq.f32.partialorder %v818, %v2445
        %vm2474 = vcmp.eq.f32.partialorder %v819, %v2445
        %vm2475 = vcmp.eq.f32.partialorder %v820, %v2445
        %vm2476 = vcmp.eq.f32.partialorder %v821, %v2445
        %vm2477 = vcmp.eq.f32.partialorder %v822, %v2445
        %v2478 = vsel %vm2446, 1, 0
        %v2479 = vsel %vm2447, 1, 0
        %v2480 = vsel %vm2448, 1, 0
        %v2481 = vsel %vm2449, 1, 0
        %v2482 = vsel %vm2450, 1, 0
        %v2483 = vsel %vm2451, 1, 0
        %v2484 = vsel %vm2452, 1, 0
        %v2485 = vsel %vm2453, 1, 0
        %v2486 = vsel %vm2454, 1, 0
        %v2487 = vsel %vm2455, 1, 0
        %v2488 = vsel %vm2456, 1, 0
        %v2489 = vsel %vm2457, 1, 0
        %v2490 = vsel %vm2458, 1, 0
        %v2491 = vsel %vm2459, 1, 0
        %v2492 = vsel %vm2460, 1, 0
        %v2493 = vsel %vm2461, 1, 0
        %v2494 = vsel %vm2462, 1, 0
        %v2495 = vsel %vm2463, 1, 0
        %v2496 = vsel %vm2464, 1, 0
        %v2497 = vsel %vm2465, 1, 0
        %v2498 = vsel %vm2466, 1, 0
        %v2499 = vsel %vm2467, 1, 0
        %v2500 = vsel %vm2468, 1, 0
        %v2501 = vsel %vm2469, 1, 0
        %v2502 = vsel %vm2470, 1, 0
        %v2503 = vsel %vm2471, 1, 0
        %v2504 = vsel %vm2472, 1, 0
        %v2505 = vsel %vm2473, 1, 0
        %v2506 = vsel %vm2474, 1, 0
        %v2507 = vsel %vm2475, 1, 0
        %v2508 = vsel %vm2476, 1, 0
        %v2509 = vsel %vm2477, 1, 0
        %v2510 = vcvt.s32.f32 %v2478
        %v2511 = vcvt.s32.f32 %v2479
        %v2512 = vcvt.s32.f32 %v2480
        %v2513 = vcvt.s32.f32 %v2481
        %v2514 = vcvt.s32.f32 %v2482
        %v2515 = vcvt.s32.f32 %v2483
        %v2516 = vcvt.s32.f32 %v2484
        %v2517 = vcvt.s32.f32 %v2485
        %v2518 = vcvt.s32.f32 %v2486
        %v2519 = vcvt.s32.f32 %v2487
        %v2520 = vcvt.s32.f32 %v2488
        %v2521 = vcvt.s32.f32 %v2489
        %v2522 = vcvt.s32.f32 %v2490
        %v2523 = vcvt.s32.f32 %v2491
        %v2524 = vcvt.s32.f32 %v2492
        %v2525 = vcvt.s32.f32 %v2493
        %v2526 = vcvt.s32.f32 %v2494
        %v2527 = vcvt.s32.f32 %v2495
        %v2528 = vcvt.s32.f32 %v2496
        %v2529 = vcvt.s32.f32 %v2497
        %v2530 = vcvt.s32.f32 %v2498
        %v2531 = vcvt.s32.f32 %v2499
        %v2532 = vcvt.s32.f32 %v2500
        %v2533 = vcvt.s32.f32 %v2501
        %v2534 = vcvt.s32.f32 %v2502
        %v2535 = vcvt.s32.f32 %v2503
        %v2536 = vcvt.s32.f32 %v2504
        %v2537 = vcvt.s32.f32 %v2505
        %v2538 = vcvt.s32.f32 %v2506
        %v2539 = vcvt.s32.f32 %v2507
        %v2540 = vcvt.s32.f32 %v2508
        %v2541 = vcvt.s32.f32 %v2509
        %v2542 = vadd.f32 %v2344, %v448
        %v2543 = vmax.f32 %v2542, 1e-20
        %v2544 = vrsqrt.pop %v2543
        %v2545 = vmul.f32 %v2544, %v2543
        %v2546 = vmul.f32 %v2545, %v2544
        %v2547 = vmul.f32 0.5, %v2546
        %v2548 = vsub.f32 1.5, %v2547
        %v2549 = vmul.f32 %v2544, %v2548
        %vm2550 = vweird.f32 %v2543
        %vm2551 = vweird.f32 %v2544
        %vm2552 = vmor %vm2550, %vm2551
        %v2553 = vsel %vm2552, %v2544, %v2549
        %2554 = vmatpush.msra.mxu0 %v2525
        %2555 = vmatpush.msra.mxu0 %v2524
        %2556 = vmatpush.msra.mxu0 %v2523
        %2557 = vmatpush.msra.mxu0 %v2522
        %2558 = vmatpush.msra.mxu0 %v2521
        %2559 = vmatpush.msra.mxu0 %v2520
        %2560 = vmatpush.msra.mxu0 %v2519
        %2561 = vmatpush.msra.mxu0 %v2518
        %2562 = vmatpush.msra.mxu0 %v2517
        %2563 = vmatpush.msra.mxu0 %v2516
        %2564 = vmatpush.msra.mxu0 %v2515
        %2565 = vmatpush.msra.mxu0 %v2514
        %2566 = vmatpush.msra.mxu0 %v2513
        %2567 = vmatpush.msra.mxu0 %v2512
        %2568 = vmatpush.msra.mxu0 %v2511
        %2569 = vmatpush.msra.mxu0 %v2510
        %2570 = vmatmul.f32.gmra.mxu0 %v953
        %v2571 = vpop.f32.mrf.mxu0
        %v2572 = vadd.f32 0.0, %v2571
        %2573 = vmatmul.f32.gmra.mxu0 %v956
        %v2574 = vpop.f32.mrf.mxu0
        %v2575 = vadd.f32 0.0, %v2574
        %2576 = vmatmul.f32.gmra.mxu0 %v959
        %v2577 = vpop.f32.mrf.mxu0
        %v2578 = vadd.f32 0.0, %v2577
        %2579 = vmatmul.f32.gmra.mxu0 %v962
        %v2580 = vpop.f32.mrf.mxu0
        %v2581 = vadd.f32 0.0, %v2580
        %2582 = vdwg.mxu0
        %2583 = vmatpush.msra.mxu0 %v2541
        %2584 = vmatpush.msra.mxu0 %v2540
        %2585 = vmatpush.msra.mxu0 %v2539
        %2586 = vmatpush.msra.mxu0 %v2538
        %2587 = vmatpush.msra.mxu0 %v2537
        %2588 = vmatpush.msra.mxu0 %v2536
        %2589 = vmatpush.msra.mxu0 %v2535
        %2590 = vmatpush.msra.mxu0 %v2534
        %2591 = vmatpush.msra.mxu0 %v2533
        %2592 = vmatpush.msra.mxu0 %v2532
        %2593 = vmatpush.msra.mxu0 %v2531
        %2594 = vmatpush.msra.mxu0 %v2530
        %2595 = vmatpush.msra.mxu0 %v2529
        %2596 = vmatpush.msra.mxu0 %v2528
        %2597 = vmatpush.msra.mxu0 %v2527
        %2598 = vmatpush.msra.mxu0 %v2526
        %2599 = vmatmul.f32.gmra.mxu0 %v982
        %v2600 = vpop.f32.mrf.mxu0
        %v2601 = vadd.f32 %v2572, %v2600
        %2602 = vmatmul.f32.gmra.mxu0 %v985
        %v2603 = vpop.f32.mrf.mxu0
        %v2604 = vadd.f32 %v2575, %v2603
        %2605 = vmatmul.f32.gmra.mxu0 %v988
        %v2606 = vpop.f32.mrf.mxu0
        %v2607 = vadd.f32 %v2578, %v2606
        %2608 = vmatmul.f32.gmra.mxu0 %v991
        %v2609 = vpop.f32.mrf.mxu0
        %v2610 = vadd.f32 %v2581, %v2609
        %2611 = vdwg.mxu0
        %v2612 = vadd.f32 %v1086, %v2601
        %v2613 = vadd.f32 %v1087, %v2604
        %v2614 = vadd.f32 %v1088, %v2607
        %v2615 = vadd.f32 %v1089, %v2610
        %v2616 = vmul.f32 %v2612, 0.1
        %v2617 = vmul.f32 %v2613, 0.1
        %v2618 = vmul.f32 %v2614, 0.1
        %v2619 = vmul.f32 %v2615, 0.1
        %v2620 = vmax.f32 %v2612, %v2616
        %v2621 = vmax.f32 %v2613, %v2617
        %v2622 = vmax.f32 %v2614, %v2618
        %v2623 = vmax.f32 %v2615, %v2619
        %2624 = vmatpush.msra.mxu0 0.0
        %2625 = vmatpush.msra.mxu0 0.0
        %2626 = vmatpush.msra.mxu0 0.0
        %2627 = vmatpush.msra.mxu0 0.0
        %2628 = vmatpush.msra.mxu0 0.0
        %2629 = vmatpush.msra.mxu0 0.0
        %2630 = vmatpush.msra.mxu0 0.0
        %2631 = vmatpush.msra.mxu0 0.0
        %2632 = vmatpush.msra.mxu0 0.0
        %2633 = vmatpush.msra.mxu0 0.0
        %2634 = vmatpush.msra.mxu0 0.0
        %2635 = vmatpush.msra.mxu0 0.0
        %2636 = vmatpush.msra.mxu0 %v2623
        %2637 = vmatpush.msra.mxu0 %v2622
        %2638 = vmatpush.msra.mxu0 %v2621
        %2639 = vmatpush.msra.mxu0 %v2620
        %2640 = vmatmul.f32.gmra.mxu0 %v1436
        %v2641 = vpop.f32.mrf.mxu0
        %v2642 = vadd.f32 %v1417, %v2641
        %2643 = vmatmul.f32.gmra.mxu0 %v1439
        %v2644 = vpop.f32.mrf.mxu0
        %v2645 = vadd.f32 %v1422, %v2644
        %2646 = vmatmul.f32.gmra.mxu0 %v1442
        %v2647 = vpop.f32.mrf.mxu0
        %v2648 = vadd.f32 %v1427, %v2647
        %2649 = vmatmul.f32.gmra.mxu0 %v1445
        %v2650 = vpop.f32.mrf.mxu0
        %v2651 = vadd.f32 %v1432, %v2650
        %2652 = vdwg.mxu0
        %v2653 = vmul.f32 %v2642, 0.1
        %v2654 = vmul.f32 %v2645, 0.1
        %v2655 = vmul.f32 %v2648, 0.1
        %v2656 = vmul.f32 %v2651, 0.1
        %v2657 = vmax.f32 %v2642, %v2653
        %v2658 = vmax.f32 %v2645, %v2654
        %v2659 = vmax.f32 %v2648, %v2655
        %v2660 = vmax.f32 %v2651, %v2656
        %v2661 = vmul.f32 %v2553, %v2657
        %v2662 = vmul.f32 %v2553, %v2658
        %v2663 = vmul.f32 %v2553, %v2659
        %v2664 = vmul.f32 %v2553, %v2660
        %v2665 = vadd.f32 %v2271, %v2661
        %v2666 = vadd.f32 %v2272, %v2662
        %v2667 = vadd.f32 %v2273, %v2663
        %v2668 = vadd.f32 %v2274, %v2664
        %v2669 = vadd.f32 %v2275, %v2553
        %v2670 = vrcp.pop %v2669
        %v2671 = vmul.f32 %v2669, %v2670
        %v2672 = vsub.f32 1.0, %v2671
        %v2673 = vmul.f32 %v2670, %v2672
        %v2674 = vadd.f32 %v2670, %v2673
        %vm2675 = vweird.f32 %v2669
        %vm2676 = vweird.f32 %v2670
        %vm2677 = vmor %vm2675, %vm2676
        %v2678 = vsel %vm2677, %v2670, %v2674
        %v2679 = vand.u32 2147483647, %v2669
        %vm2680 = vcmp.eq.f32.partialorder %v2679, 8.507059e+37
        %v2681 = vand.u32 %v2669, 2147483648
        %v2682 = vor.u32 1.1754944e-38, %v2681
        %v2683 = vsel %vm2680, %v2682, %v2678
        %v2684 = vmul.f32 1.0, %v2683
        %v2685 = vmul.f32 %v2665, %v2684
        %v2686 = vmul.f32 %v2666, %v2684
        %v2687 = vmul.f32 %v2667, %v2684
        %v2688 = vmul.f32 %v2668, %v2684
        %2689 = vst [vmem:[%s413] sm:$0xff] %v2685
        %2690 = vst [vmem:[%s413 + $0x8] sm:$0xff] %v2686
        %2691 = vst [vmem:[%s413 + $0x10] sm:$0xff] %v2687
        %2692 = vst [vmem:[%s413 + $0x18] sm:$0xff] %v2688
        %s2693 = sand.u32 %s236, 1
        %s2694 = scalar_lea.sflag [#allocation4], %s2693
        %s2695 = sand.u32 %s236, 1
        %s2696 = smul.addr %s2695, 32
        %s2697 = scalar_lea.vmem [#allocation3], %s2696
        // Predicated region
        $region91: #{cost_volume_pallas.1} parent=85 // pred_check
          %p2698 = pneg %p246
        $region92: #{cost_volume_pallas.1} parent=85 // pred_check_branch
          %2700 = sbr.rel (%p2698) target = $region94
        $region93: #{cost_volume_pallas.1} parent=85 // pred_region
          %2702 = vsyncadd %s2694, 0
          %s2703 = smul.addr %s26, 8
          %s2704 = sadd.s32 %s27, %s2703
          %s2705 = smul.addr %s2704, 8
          %s2706 = scalar_lea.hbm %s8, %s2705
          %s2707 = sshll.u32 %s2697, 4
          %s2708 = int_to_ptr.vmem [resolvable:$true] %s2707
          %s2709 = sshll.u32 %s2706, 4
          %s2710 = int_to_ptr.hbm [resolvable:$true] %s2709
          %2715 = dma.vmem_to_hbm [thread:$0]  %s2708, 512, %s2710, %s2694, 128, 256, 8
        $region94: #{cost_volume_pallas.1} parent=85 // pred_fallthru
          _
      $region86: #{cost_volume_pallas.1} parent=5 // pred_fallthru
        _
      %p2716 = scmp.le.s32.totalorder 2, %s17
      // Predicated region
      $region95: #{cost_volume_pallas.1} parent=5 // pred_check
        %p2717 = pneg %p2716
      $region96: #{cost_volume_pallas.1} parent=5 // pred_check_branch
        %2719 = sbr.rel (%p2717) target = $region98
      $region97: #{cost_volume_pallas.1} parent=5 // pred_region
        %s2720 = ssub.s32 %s17, 2
        // Predicated region
        $region99: #{cost_volume_pallas.1} parent=97 // pred_check
          %p2721 = pneg %p252
        $region100: #{cost_volume_pallas.1} parent=97 // pred_check_branch
          %2723 = sbr.rel (%p2721) target = $region102
        $region101: #{cost_volume_pallas.1} parent=97 // pred_region
          %s2724 = sand.u32 %s237, 1
          %s2725 = scalar_lea.sflag [#allocation4], %s2724
          %s2726 = sand.u32 %s237, 1
          %s2727 = smul.addr %s2726, 32
          %s2728 = scalar_lea.vmem [#allocation3], %s2727
          %2730 = dma.done %s2725, 512
        $region102: #{cost_volume_pallas.1} parent=97 // pred_fallthru
          _
      $region98: #{cost_volume_pallas.1} parent=5 // pred_fallthru
        _
    $region6: #{cost_volume_pallas.1} parent=1 // loop_footer
      %s21 = sadd.s32 1, %s17
    $region7: #{cost_volume_pallas.1} parent=1 // loop_footer_branch
      %16 = sbr.rel target = $region3
    $region8: #{cost_volume_pallas.1} parent=1 // loop_exit
      _
    %2731 = vsyncpa [#allocation4], 1
    %s2732 = scalar_lea.sflag [#allocation4], 1
    %2733 = vsyncpa %s2732, 1

</llo_original>
